<compile_context>
chip_gen: v6e
topology: v6e:2x2x1
jax: 0.10.0
libtpu: 0.0.40
codegen_flags: <defaults>
</compile_context>

<pallas_src>
import functools

import jax
import jax.numpy as jnp
from jax.experimental import pallas as pl
from jax.experimental.pallas import tpu as pltpu


def _qnet_rnn_fused_kernel(
    x_ref,      # (T*B, OBS) bf16 — all timesteps, flattened
    h0_ref,     # (B, H)     f32  — initial hidden state
    w1_ref,     # (OBS, H)   bf16
    b1_ref,     # (1, H)     f32
    wi_ref,     # (H, 3H)    bf16  [W_ir | W_iz | W_in]
    wh_ref,     # (H, 3H)    bf16  [W_hr | W_hz | W_hn]
    bi_ref,     # (1, 3H)    f32   [b_ir | b_iz | b_in]
    bh_ref,     # (1, 3H)    f32   [b_hr | b_hz | b_hn]
    w2_ref,     # (H, A)     bf16
    b2_ref,     # (1, A)     f32
    q_ref,      # (T*B, A)   f32  out — all per-step Q values, one slab
    hlast_ref,  # (B, H)     f32  out — final hidden state
    hseq_ref,   # (T*B, H)   f32  VMEM scratch — stacked hidden states
    *,
    T, B,
):
    H = h0_ref.shape[1]

    # Hoist weight / bias loads out of the (unrolled) time loop.
    w1 = w1_ref[...]
    b1 = b1_ref[...]
    wi = wi_ref[...]
    wh = wh_ref[...]
    bi = bi_ref[...]
    bh = bh_ref[...]
    w2 = w2_ref[...]
    b2 = b2_ref[...]

    # ---- Non-recurrent part, batched over all T steps (M = T*B rows) ----
    x = x_ref[...]                                                    # (T*B, OBS) bf16
    a = jnp.dot(x, w1, preferred_element_type=jnp.float32) + b1       # fc1, f32 acc
    a = jnp.maximum(a, 0.0)                                           # ReLU
    gi_all = jnp.dot(a.astype(jnp.bfloat16), wi,
                     preferred_element_type=jnp.float32) + bi         # (T*B, 3H) f32

    # ---- Serial recurrence: only gh = h @ Wh_cat stays in the loop ----
    h = h0_ref[...]                                                   # (B, H) f32
    for t in range(T):  # T is static & small: fully unrolled, static slices
        gi = gi_all[t * B:(t + 1) * B, :]                             # (B, 3H) f32
        gh = jnp.dot(h.astype(jnp.bfloat16), wh,
                     preferred_element_type=jnp.float32) + bh         # (B, 3H) f32
        # PyTorch GRUCell gate semantics (r, z, n); all gate math in f32.
        r = jax.nn.sigmoid(gi[:, 0 * H:1 * H] + gh[:, 0 * H:1 * H])
        z = jax.nn.sigmoid(gi[:, 1 * H:2 * H] + gh[:, 1 * H:2 * H])
        n = jnp.tanh(gi[:, 2 * H:3 * H] + r * gh[:, 2 * H:3 * H])
        h = (1.0 - z) * n + z * h
        hseq_ref[t * B:(t + 1) * B, :] = h                            # one tiny store/step

    hlast_ref[...] = h                                                # written once

    # ---- fc2 once on the stacked hidden states: single matmul, single store ----
    h_all = hseq_ref[...]                                             # (T*B, H) f32
    q_ref[...] = jnp.dot(h_all.astype(jnp.bfloat16), w2,
                         preferred_element_type=jnp.float32) + b2


def q_network_rnn_rollout(x_seq, h0, prep):
    """Run the whole T-step rollout in one gridless pallas_call.

    Returns (Q[T, B, A] f32, h_last[B, H] f32).
    """
    T, B, OBS = x_seq.shape
    H = h0.shape[1]
    A = prep["w2"].shape[1]

    # Flatten the time axis into the matmul M dimension and pre-cast to bf16
    # once in the wrapper (removes per-step casts inside the kernel).
    x2d = x_seq.reshape(T * B, OBS).astype(jnp.bfloat16)

    vmem_spec = pl.BlockSpec(memory_space=pltpu.MemorySpace.VMEM)

    q2d, h_last = pl.pallas_call(
        functools.partial(_qnet_rnn_fused_kernel, T=T, B=B),
        out_shape=(
            jax.ShapeDtypeStruct((T * B, A), jnp.float32),
            jax.ShapeDtypeStruct((B, H), jnp.float32),
        ),
        in_specs=[vmem_spec] * 10,
        out_specs=(vmem_spec, vmem_spec),
        scratch_shapes=[pltpu.VMEM((T * B, H), jnp.float32)],
    )(x2d, h0, prep["w1"], prep["b1"], prep["wi"], prep["wh"],
      prep["bi"], prep["bh"], prep["w2"], prep["b2"])

    return q2d.reshape(T, B, A), h_last


def init_params(key, obs_dim, hidden_dim, n_actions):
    """Deterministic synthetic parameters (PyTorch-like uniform init), distinct keys per tensor."""
    ks = jax.random.split(key, 16)

    def u(k, shape, fan_in):
        bound = 1.0 / jnp.sqrt(fan_in)
        return jax.random.uniform(k, shape, jnp.float32, -bound, bound)

    H = hidden_dim
    return {
        "w1": u(ks[0], (obs_dim, H), obs_dim), "b1": u(ks[1], (1, H), obs_dim),
        "w_ir": u(ks[2], (H, H), H), "w_iz": u(ks[3], (H, H), H), "w_in": u(ks[4], (H, H), H),
        "b_ir": u(ks[5], (1, H), H), "b_iz": u(ks[6], (1, H), H), "b_in": u(ks[7], (1, H), H),
        "w_hr": u(ks[8], (H, H), H), "w_hz": u(ks[9], (H, H), H), "w_hn": u(ks[10], (H, H), H),
        "b_hr": u(ks[11], (1, H), H), "b_hz": u(ks[12], (1, H), H), "b_hn": u(ks[13], (1, H), H),
        "w2": u(ks[14], (H, n_actions), H), "b2": u(ks[15], (1, n_actions), H),
    }


def prepare_params(p):
    """Concat GRU gate weights/biases and cast weights to bf16 for the MXU."""
    wi = jnp.concatenate([p["w_ir"], p["w_iz"], p["w_in"]], axis=1)
    wh = jnp.concatenate([p["w_hr"], p["w_hz"], p["w_hn"]], axis=1)
    bi = jnp.concatenate([p["b_ir"], p["b_iz"], p["b_in"]], axis=1)
    bh = jnp.concatenate([p["b_hr"], p["b_hz"], p["b_hn"]], axis=1)
    return {
        "w1": p["w1"].astype(jnp.bfloat16), "b1": p["b1"],
        "wi": wi.astype(jnp.bfloat16), "wh": wh.astype(jnp.bfloat16),
        "bi": bi, "bh": bh,
        "w2": p["w2"].astype(jnp.bfloat16), "b2": p["b2"],
    }


def reference_rollout(x_seq, h0, raw, bf16=True):
    """Pure-JAX reference matching PyTorch GRUCell semantics (optionally bf16 matmuls)."""
    dt = jnp.bfloat16 if bf16 else jnp.float32

    def mm(a, w):
        return jax.lax.dot(a.astype(dt), w.astype(dt),
                           preferred_element_type=jnp.float32)

    h = h0
    qs = []
    for t in range(x_seq.shape[0]):
        x = x_seq[t]
        a = jax.nn.relu(mm(x, raw["w1"]) + raw["b1"])
        r = jax.nn.sigmoid(mm(a, raw["w_ir"]) + raw["b_ir"] + mm(h, raw["w_hr"]) + raw["b_hr"])
        z = jax.nn.sigmoid(mm(a, raw["w_iz"]) + raw["b_iz"] + mm(h, raw["w_hz"]) + raw["b_hz"])
        n = jnp.tanh(mm(a, raw["w_in"]) + raw["b_in"] + r * (mm(h, raw["w_hn"]) + raw["b_hn"]))
        h = (1.0 - z) * n + z * h
        qs.append(mm(h, raw["w2"]) + raw["b2"])
    return jnp.stack(qs), h


if __name__ == "__main__":
    T = 8            # rollout length (recurrent steps fused into one kernel call)
    B = 8            # batch of agents (increase to >=128 in production for MXU fill)
    OBS_DIM = 32     # input_shape
    H = 32           # args.rnn_hidden_dim
    N_ACTIONS = 8    # args.n_actions

    key = jax.random.PRNGKey(0)
    k_in, k_par = jax.random.split(key)

    raw_params = init_params(k_par, OBS_DIM, H, N_ACTIONS)
    prep_params = prepare_params(raw_params)

    x_seq = jax.random.normal(k_in, (T, B, OBS_DIM), dtype=jnp.float32)
    h0 = jnp.zeros((B, H), dtype=jnp.float32)  # PyTorch: self.rnn_hidden = None -> zeros

    q, h_last = q_network_rnn_rollout(x_seq, h0, prep_params)
    jax.block_until_ready((q, h_last))

    # Tight check vs. a reference using the same bf16-weight matmuls.
    q_ref, h_ref = reference_rollout(x_seq, h0, raw_params, bf16=True)
    assert jnp.allclose(q, q_ref, atol=2e-3), "Q mismatch vs bf16 reference"
    assert jnp.allclose(h_last, h_ref, atol=2e-3), "hidden mismatch vs bf16 reference"

    # Looser fidelity check vs. the pure-f32 (PyTorch-equivalent) forward.
    q32, h32 = reference_rollout(x_seq, h0, raw_params, bf16=False)
    assert jnp.allclose(q, q32, atol=5e-2), "Q deviates too much from f32 reference"
    assert jnp.allclose(h_last, h32, atol=5e-2), "hidden deviates too much from f32 reference"

    # Chain a second rollout to exercise the recurrent hand-off across calls.
    q2, h2 = q_network_rnn_rollout(x_seq, h_last, prep_params)
    jax.block_until_ready((q2, h2))
    q2_ref, h2_ref = reference_rollout(x_seq, h_ref, raw_params, bf16=True)
    assert jnp.allclose(q2, q2_ref, atol=2e-3), "Q (rollout 2) mismatch"
    assert jnp.allclose(h2, h2_ref, atol=2e-3), "hidden (rollout 2) mismatch"

    print("KERNEL_OK")
</pallas_src>

<mosaic_0001>
module attributes {stable_mosaic.version = 11 : i64} {
  func.func @_qnet_rnn_fused_kernel(%arg0: memref<64x32xbf16, #tpu.memory_space<vmem>>, %arg1: memref<8x32xf32, #tpu.memory_space<vmem>>, %arg2: memref<32x32xbf16, #tpu.memory_space<vmem>>, %arg3: memref<1x32xf32, #tpu.memory_space<vmem>>, %arg4: memref<32x96xbf16, #tpu.memory_space<vmem>>, %arg5: memref<32x96xbf16, #tpu.memory_space<vmem>>, %arg6: memref<1x96xf32, #tpu.memory_space<vmem>>, %arg7: memref<1x96xf32, #tpu.memory_space<vmem>>, %arg8: memref<32x8xbf16, #tpu.memory_space<vmem>>, %arg9: memref<1x8xf32, #tpu.memory_space<vmem>>, %arg10: memref<64x8xf32, #tpu.memory_space<vmem>>, %arg11: memref<8x32xf32, #tpu.memory_space<vmem>>, %arg12: memref<64x32xf32, #tpu.memory_space<vmem>>) attributes {dimension_semantics = [], scalar_prefetch = 0 : i64, scratch_operands = 1 : i64, tpu.core_type = #tpu.core_type<tc>} {
    %c0 = arith.constant 0 : index
    %c0_0 = arith.constant 0 : index
    %0 = vector.load %arg2[%c0, %c0_0] : memref<32x32xbf16, #tpu.memory_space<vmem>>, vector<32x32xbf16>
    %c0_1 = arith.constant 0 : index
    %c0_2 = arith.constant 0 : index
    %1 = vector.load %arg3[%c0_1, %c0_2] : memref<1x32xf32, #tpu.memory_space<vmem>>, vector<1x32xf32>
    %c0_3 = arith.constant 0 : index
    %c0_4 = arith.constant 0 : index
    %2 = vector.load %arg4[%c0_3, %c0_4] : memref<32x96xbf16, #tpu.memory_space<vmem>>, vector<32x96xbf16>
    %c0_5 = arith.constant 0 : index
    %c0_6 = arith.constant 0 : index
    %3 = vector.load %arg5[%c0_5, %c0_6] : memref<32x96xbf16, #tpu.memory_space<vmem>>, vector<32x96xbf16>
    %c0_7 = arith.constant 0 : index
    %c0_8 = arith.constant 0 : index
    %4 = vector.load %arg6[%c0_7, %c0_8] : memref<1x96xf32, #tpu.memory_space<vmem>>, vector<1x96xf32>
    %c0_9 = arith.constant 0 : index
    %c0_10 = arith.constant 0 : index
    %5 = vector.load %arg7[%c0_9, %c0_10] : memref<1x96xf32, #tpu.memory_space<vmem>>, vector<1x96xf32>
    %c0_11 = arith.constant 0 : index
    %c0_12 = arith.constant 0 : index
    %6 = vector.load %arg8[%c0_11, %c0_12] : memref<32x8xbf16, #tpu.memory_space<vmem>>, vector<32x8xbf16>
    %c0_13 = arith.constant 0 : index
    %c0_14 = arith.constant 0 : index
    %7 = vector.load %arg9[%c0_13, %c0_14] : memref<1x8xf32, #tpu.memory_space<vmem>>, vector<1x8xf32>
    %c0_15 = arith.constant 0 : index
    %c0_16 = arith.constant 0 : index
    %8 = vector.load %arg0[%c0_15, %c0_16] : memref<64x32xbf16, #tpu.memory_space<vmem>>, vector<64x32xbf16>
    %cst = arith.constant dense<0.000000e+00> : vector<64x32xf32>
    %9 = tpu.matmul %8, %0, %cst {dimension_numbers = #tpu.dot_dimension_numbers<[1], [0], [0], [1], [0, 0, 1, 1], [], []>} : vector<64x32xbf16>, vector<32x32xbf16>, vector<64x32xf32> -> vector<64x32xf32>
    %10 = vector.broadcast %1 : vector<1x32xf32> to vector<64x32xf32>
    %11 = arith.addf %9, %10 : vector<64x32xf32>
    %cst_17 = arith.constant 0.000000e+00 : f32
    %12 = vector.broadcast %cst_17 : f32 to vector<64x32xf32>
    %13 = arith.maximumf %11, %12 : vector<64x32xf32>
    %14 = arith.truncf %13 : vector<64x32xf32> to vector<64x32xbf16>
    %cst_18 = arith.constant dense<0.000000e+00> : vector<64x96xf32>
    %15 = tpu.matmul %14, %2, %cst_18 {dimension_numbers = #tpu.dot_dimension_numbers<[1], [0], [0], [1], [0, 0, 1, 1], [], []>} : vector<64x32xbf16>, vector<32x96xbf16>, vector<64x96xf32> -> vector<64x96xf32>
    %16 = vector.broadcast %4 : vector<1x96xf32> to vector<64x96xf32>
    %17 = arith.addf %15, %16 : vector<64x96xf32>
    %c0_19 = arith.constant 0 : index
    %c0_20 = arith.constant 0 : index
    %18 = vector.load %arg1[%c0_19, %c0_20] : memref<8x32xf32, #tpu.memory_space<vmem>>, vector<8x32xf32>
    %19 = vector.extract_strided_slice %17 {offsets = [0, 0], sizes = [8, 96], strides = [1, 1]} : vector<64x96xf32> to vector<8x96xf32>
    %20 = arith.truncf %18 : vector<8x32xf32> to vector<8x32xbf16>
    %cst_21 = arith.constant dense<0.000000e+00> : vector<8x96xf32>
    %21 = tpu.matmul %20, %3, %cst_21 {dimension_numbers = #tpu.dot_dimension_numbers<[1], [0], [0], [1], [0, 0, 1, 1], [], []>} : vector<8x32xbf16>, vector<32x96xbf16>, vector<8x96xf32> -> vector<8x96xf32>
    %22 = vector.broadcast %5 : vector<1x96xf32> to vector<8x96xf32>
    %23 = arith.addf %21, %22 : vector<8x96xf32>
    %24 = vector.extract_strided_slice %19 {offsets = [0, 0], sizes = [8, 32], strides = [1, 1]} : vector<8x96xf32> to vector<8x32xf32>
    %25 = vector.extract_strided_slice %23 {offsets = [0, 0], sizes = [8, 32], strides = [1, 1]} : vector<8x96xf32> to vector<8x32xf32>
    %26 = arith.addf %24, %25 : vector<8x32xf32>
    %27 = arith.negf %26 : vector<8x32xf32>
    %28 = math.exp %27 : vector<8x32xf32>
    %cst_22 = arith.constant 1.000000e+00 : f32
    %29 = vector.broadcast %cst_22 : f32 to vector<8x32xf32>
    %30 = arith.addf %29, %28 : vector<8x32xf32>
    %31 = arith.divf %29, %30 : vector<8x32xf32>
    %32 = vector.extract_strided_slice %19 {offsets = [0, 32], sizes = [8, 32], strides = [1, 1]} : vector<8x96xf32> to vector<8x32xf32>
    %33 = vector.extract_strided_slice %23 {offsets = [0, 32], sizes = [8, 32], strides = [1, 1]} : vector<8x96xf32> to vector<8x32xf32>
    %34 = arith.addf %32, %33 : vector<8x32xf32>
    %35 = arith.negf %34 : vector<8x32xf32>
    %36 = math.exp %35 : vector<8x32xf32>
    %cst_23 = arith.constant 1.000000e+00 : f32
    %37 = vector.broadcast %cst_23 : f32 to vector<8x32xf32>
    %38 = arith.addf %37, %36 : vector<8x32xf32>
    %39 = arith.divf %37, %38 : vector<8x32xf32>
    %40 = vector.extract_strided_slice %19 {offsets = [0, 64], sizes = [8, 32], strides = [1, 1]} : vector<8x96xf32> to vector<8x32xf32>
    %41 = vector.extract_strided_slice %23 {offsets = [0, 64], sizes = [8, 32], strides = [1, 1]} : vector<8x96xf32> to vector<8x32xf32>
    %42 = arith.mulf %31, %41 : vector<8x32xf32>
    %43 = arith.addf %40, %42 : vector<8x32xf32>
    %44 = math.tanh %43 : vector<8x32xf32>
    %cst_24 = arith.constant 1.000000e+00 : f32
    %45 = vector.broadcast %cst_24 : f32 to vector<8x32xf32>
    %46 = arith.subf %45, %39 : vector<8x32xf32>
    %47 = arith.mulf %46, %44 : vector<8x32xf32>
    %48 = arith.mulf %39, %18 : vector<8x32xf32>
    %49 = arith.addf %47, %48 : vector<8x32xf32>
    %c0_25 = arith.constant 0 : index
    %c0_26 = arith.constant 0 : index
    %50 = vector.load %arg12[%c0_25, %c0_26] : memref<64x32xf32, #tpu.memory_space<vmem>>, vector<8x32xf32>
    tpu.vector_store %arg12[%c0_25, %c0_26], %49 {strides = array<i32>} : memref<64x32xf32, #tpu.memory_space<vmem>>, vector<8x32xf32>,
    %51 = vector.extract_strided_slice %17 {offsets = [8, 0], sizes = [8, 96], strides = [1, 1]} : vector<64x96xf32> to vector<8x96xf32>
    %52 = arith.truncf %49 : vector<8x32xf32> to vector<8x32xbf16>
    %cst_27 = arith.constant dense<0.000000e+00> : vector<8x96xf32>
    %53 = tpu.matmul %52, %3, %cst_27 {dimension_numbers = #tpu.dot_dimension_numbers<[1], [0], [0], [1], [0, 0, 1, 1], [], []>} : vector<8x32xbf16>, vector<32x96xbf16>, vector<8x96xf32> -> vector<8x96xf32>
    %54 = vector.broadcast %5 : vector<1x96xf32> to vector<8x96xf32>
    %55 = arith.addf %53, %54 : vector<8x96xf32>
    %56 = vector.extract_strided_slice %51 {offsets = [0, 0], sizes = [8, 32], strides = [1, 1]} : vector<8x96xf32> to vector<8x32xf32>
    %57 = vector.extract_strided_slice %55 {offsets = [0, 0], sizes = [8, 32], strides = [1, 1]} : vector<8x96xf32> to vector<8x32xf32>
    %58 = arith.addf %56, %57 : vector<8x32xf32>
    %59 = arith.negf %58 : vector<8x32xf32>
    %60 = math.exp %59 : vector<8x32xf32>
    %cst_28 = arith.constant 1.000000e+00 : f32
    %61 = vector.broadcast %cst_28 : f32 to vector<8x32xf32>
    %62 = arith.addf %61, %60 : vector<8x32xf32>
    %63 = arith.divf %61, %62 : vector<8x32xf32>
    %64 = vector.extract_strided_slice %51 {offsets = [0, 32], sizes = [8, 32], strides = [1, 1]} : vector<8x96xf32> to vector<8x32xf32>
    %65 = vector.extract_strided_slice %55 {offsets = [0, 32], sizes = [8, 32], strides = [1, 1]} : vector<8x96xf32> to vector<8x32xf32>
    %66 = arith.addf %64, %65 : vector<8x32xf32>
    %67 = arith.negf %66 : vector<8x32xf32>
    %68 = math.exp %67 : vector<8x32xf32>
    %cst_29 = arith.constant 1.000000e+00 : f32
    %69 = vector.broadcast %cst_29 : f32 to vector<8x32xf32>
    %70 = arith.addf %69, %68 : vector<8x32xf32>
    %71 = arith.divf %69, %70 : vector<8x32xf32>
    %72 = vector.extract_strided_slice %51 {offsets = [0, 64], sizes = [8, 32], strides = [1, 1]} : vector<8x96xf32> to vector<8x32xf32>
    %73 = vector.extract_strided_slice %55 {offsets = [0, 64], sizes = [8, 32], strides = [1, 1]} : vector<8x96xf32> to vector<8x32xf32>
    %74 = arith.mulf %63, %73 : vector<8x32xf32>
    %75 = arith.addf %72, %74 : vector<8x32xf32>
    %76 = math.tanh %75 : vector<8x32xf32>
    %cst_30 = arith.constant 1.000000e+00 : f32
    %77 = vector.broadcast %cst_30 : f32 to vector<8x32xf32>
    %78 = arith.subf %77, %71 : vector<8x32xf32>
    %79 = arith.mulf %78, %76 : vector<8x32xf32>
    %80 = arith.mulf %71, %49 : vector<8x32xf32>
    %81 = arith.addf %79, %80 : vector<8x32xf32>
    %c8 = arith.constant 8 : index
    %c0_31 = arith.constant 0 : index
    %82 = vector.load %arg12[%c8, %c0_31] : memref<64x32xf32, #tpu.memory_space<vmem>>, vector<8x32xf32>
    tpu.vector_store %arg12[%c8, %c0_31], %81 {strides = array<i32>} : memref<64x32xf32, #tpu.memory_space<vmem>>, vector<8x32xf32>,
    %83 = vector.extract_strided_slice %17 {offsets = [16, 0], sizes = [8, 96], strides = [1, 1]} : vector<64x96xf32> to vector<8x96xf32>
    %84 = arith.truncf %81 : vector<8x32xf32> to vector<8x32xbf16>
    %cst_32 = arith.constant dense<0.000000e+00> : vector<8x96xf32>
    %85 = tpu.matmul %84, %3, %cst_32 {dimension_numbers = #tpu.dot_dimension_numbers<[1], [0], [0], [1], [0, 0, 1, 1], [], []>} : vector<8x32xbf16>, vector<32x96xbf16>, vector<8x96xf32> -> vector<8x96xf32>
    %86 = vector.broadcast %5 : vector<1x96xf32> to vector<8x96xf32>
    %87 = arith.addf %85, %86 : vector<8x96xf32>
    %88 = vector.extract_strided_slice %83 {offsets = [0, 0], sizes = [8, 32], strides = [1, 1]} : vector<8x96xf32> to vector<8x32xf32>
    %89 = vector.extract_strided_slice %87 {offsets = [0, 0], sizes = [8, 32], strides = [1, 1]} : vector<8x96xf32> to vector<8x32xf32>
    %90 = arith.addf %88, %89 : vector<8x32xf32>
    %91 = arith.negf %90 : vector<8x32xf32>
    %92 = math.exp %91 : vector<8x32xf32>
    %cst_33 = arith.constant 1.000000e+00 : f32
    %93 = vector.broadcast %cst_33 : f32 to vector<8x32xf32>
    %94 = arith.addf %93, %92 : vector<8x32xf32>
    %95 = arith.divf %93, %94 : vector<8x32xf32>
    %96 = vector.extract_strided_slice %83 {offsets = [0, 32], sizes = [8, 32], strides = [1, 1]} : vector<8x96xf32> to vector<8x32xf32>
    %97 = vector.extract_strided_slice %87 {offsets = [0, 32], sizes = [8, 32], strides = [1, 1]} : vector<8x96xf32> to vector<8x32xf32>
    %98 = arith.addf %96, %97 : vector<8x32xf32>
    %99 = arith.negf %98 : vector<8x32xf32>
    %100 = math.exp %99 : vector<8x32xf32>
    %cst_34 = arith.constant 1.000000e+00 : f32
    %101 = vector.broadcast %cst_34 : f32 to vector<8x32xf32>
    %102 = arith.addf %101, %100 : vector<8x32xf32>
    %103 = arith.divf %101, %102 : vector<8x32xf32>
    %104 = vector.extract_strided_slice %83 {offsets = [0, 64], sizes = [8, 32], strides = [1, 1]} : vector<8x96xf32> to vector<8x32xf32>
    %105 = vector.extract_strided_slice %87 {offsets = [0, 64], sizes = [8, 32], strides = [1, 1]} : vector<8x96xf32> to vector<8x32xf32>
    %106 = arith.mulf %95, %105 : vector<8x32xf32>
    %107 = arith.addf %104, %106 : vector<8x32xf32>
    %108 = math.tanh %107 : vector<8x32xf32>
    %cst_35 = arith.constant 1.000000e+00 : f32
    %109 = vector.broadcast %cst_35 : f32 to vector<8x32xf32>
    %110 = arith.subf %109, %103 : vector<8x32xf32>
    %111 = arith.mulf %110, %108 : vector<8x32xf32>
    %112 = arith.mulf %103, %81 : vector<8x32xf32>
    %113 = arith.addf %111, %112 : vector<8x32xf32>
    %c16 = arith.constant 16 : index
    %c0_36 = arith.constant 0 : index
    %114 = vector.load %arg12[%c16, %c0_36] : memref<64x32xf32, #tpu.memory_space<vmem>>, vector<8x32xf32>
    tpu.vector_store %arg12[%c16, %c0_36], %113 {strides = array<i32>} : memref<64x32xf32, #tpu.memory_space<vmem>>, vector<8x32xf32>,
    %115 = vector.extract_strided_slice %17 {offsets = [24, 0], sizes = [8, 96], strides = [1, 1]} : vector<64x96xf32> to vector<8x96xf32>
    %116 = arith.truncf %113 : vector<8x32xf32> to vector<8x32xbf16>
    %cst_37 = arith.constant dense<0.000000e+00> : vector<8x96xf32>
    %117 = tpu.matmul %116, %3, %cst_37 {dimension_numbers = #tpu.dot_dimension_numbers<[1], [0], [0], [1], [0, 0, 1, 1], [], []>} : vector<8x32xbf16>, vector<32x96xbf16>, vector<8x96xf32> -> vector<8x96xf32>
    %118 = vector.broadcast %5 : vector<1x96xf32> to vector<8x96xf32>
    %119 = arith.addf %117, %118 : vector<8x96xf32>
    %120 = vector.extract_strided_slice %115 {offsets = [0, 0], sizes = [8, 32], strides = [1, 1]} : vector<8x96xf32> to vector<8x32xf32>
    %121 = vector.extract_strided_slice %119 {offsets = [0, 0], sizes = [8, 32], strides = [1, 1]} : vector<8x96xf32> to vector<8x32xf32>
    %122 = arith.addf %120, %121 : vector<8x32xf32>
    %123 = arith.negf %122 : vector<8x32xf32>
    %124 = math.exp %123 : vector<8x32xf32>
    %cst_38 = arith.constant 1.000000e+00 : f32
    %125 = vector.broadcast %cst_38 : f32 to vector<8x32xf32>
    %126 = arith.addf %125, %124 : vector<8x32xf32>
    %127 = arith.divf %125, %126 : vector<8x32xf32>
    %128 = vector.extract_strided_slice %115 {offsets = [0, 32], sizes = [8, 32], strides = [1, 1]} : vector<8x96xf32> to vector<8x32xf32>
    %129 = vector.extract_strided_slice %119 {offsets = [0, 32], sizes = [8, 32], strides = [1, 1]} : vector<8x96xf32> to vector<8x32xf32>
    %130 = arith.addf %128, %129 : vector<8x32xf32>
    %131 = arith.negf %130 : vector<8x32xf32>
    %132 = math.exp %131 : vector<8x32xf32>
    %cst_39 = arith.constant 1.000000e+00 : f32
    %133 = vector.broadcast %cst_39 : f32 to vector<8x32xf32>
    %134 = arith.addf %133, %132 : vector<8x32xf32>
    %135 = arith.divf %133, %134 : vector<8x32xf32>
    %136 = vector.extract_strided_slice %115 {offsets = [0, 64], sizes = [8, 32], strides = [1, 1]} : vector<8x96xf32> to vector<8x32xf32>
    %137 = vector.extract_strided_slice %119 {offsets = [0, 64], sizes = [8, 32], strides = [1, 1]} : vector<8x96xf32> to vector<8x32xf32>
    %138 = arith.mulf %127, %137 : vector<8x32xf32>
    %139 = arith.addf %136, %138 : vector<8x32xf32>
    %140 = math.tanh %139 : vector<8x32xf32>
    %cst_40 = arith.constant 1.000000e+00 : f32
    %141 = vector.broadcast %cst_40 : f32 to vector<8x32xf32>
    %142 = arith.subf %141, %135 : vector<8x32xf32>
    %143 = arith.mulf %142, %140 : vector<8x32xf32>
    %144 = arith.mulf %135, %113 : vector<8x32xf32>
    %145 = arith.addf %143, %144 : vector<8x32xf32>
    %c24 = arith.constant 24 : index
    %c0_41 = arith.constant 0 : index
    %146 = vector.load %arg12[%c24, %c0_41] : memref<64x32xf32, #tpu.memory_space<vmem>>, vector<8x32xf32>
    tpu.vector_store %arg12[%c24, %c0_41], %145 {strides = array<i32>} : memref<64x32xf32, #tpu.memory_space<vmem>>, vector<8x32xf32>,
    %147 = vector.extract_strided_slice %17 {offsets = [32, 0], sizes = [8, 96], strides = [1, 1]} : vector<64x96xf32> to vector<8x96xf32>
    %148 = arith.truncf %145 : vector<8x32xf32> to vector<8x32xbf16>
    %cst_42 = arith.constant dense<0.000000e+00> : vector<8x96xf32>
    %149 = tpu.matmul %148, %3, %cst_42 {dimension_numbers = #tpu.dot_dimension_numbers<[1], [0], [0], [1], [0, 0, 1, 1], [], []>} : vector<8x32xbf16>, vector<32x96xbf16>, vector<8x96xf32> -> vector<8x96xf32>
    %150 = vector.broadcast %5 : vector<1x96xf32> to vector<8x96xf32>
    %151 = arith.addf %149, %150 : vector<8x96xf32>
    %152 = vector.extract_strided_slice %147 {offsets = [0, 0], sizes = [8, 32], strides = [1, 1]} : vector<8x96xf32> to vector<8x32xf32>
    %153 = vector.extract_strided_slice %151 {offsets = [0, 0], sizes = [8, 32], strides = [1, 1]} : vector<8x96xf32> to vector<8x32xf32>
    %154 = arith.addf %152, %153 : vector<8x32xf32>
    %155 = arith.negf %154 : vector<8x32xf32>
    %156 = math.exp %155 : vector<8x32xf32>
    %cst_43 = arith.constant 1.000000e+00 : f32
    %157 = vector.broadcast %cst_43 : f32 to vector<8x32xf32>
    %158 = arith.addf %157, %156 : vector<8x32xf32>
    %159 = arith.divf %157, %158 : vector<8x32xf32>
    %160 = vector.extract_strided_slice %147 {offsets = [0, 32], sizes = [8, 32], strides = [1, 1]} : vector<8x96xf32> to vector<8x32xf32>
    %161 = vector.extract_strided_slice %151 {offsets = [0, 32], sizes = [8, 32], strides = [1, 1]} : vector<8x96xf32> to vector<8x32xf32>
    %162 = arith.addf %160, %161 : vector<8x32xf32>
    %163 = arith.negf %162 : vector<8x32xf32>
    %164 = math.exp %163 : vector<8x32xf32>
    %cst_44 = arith.constant 1.000000e+00 : f32
    %165 = vector.broadcast %cst_44 : f32 to vector<8x32xf32>
    %166 = arith.addf %165, %164 : vector<8x32xf32>
    %167 = arith.divf %165, %166 : vector<8x32xf32>
    %168 = vector.extract_strided_slice %147 {offsets = [0, 64], sizes = [8, 32], strides = [1, 1]} : vector<8x96xf32> to vector<8x32xf32>
    %169 = vector.extract_strided_slice %151 {offsets = [0, 64], sizes = [8, 32], strides = [1, 1]} : vector<8x96xf32> to vector<8x32xf32>
    %170 = arith.mulf %159, %169 : vector<8x32xf32>
    %171 = arith.addf %168, %170 : vector<8x32xf32>
    %172 = math.tanh %171 : vector<8x32xf32>
    %cst_45 = arith.constant 1.000000e+00 : f32
    %173 = vector.broadcast %cst_45 : f32 to vector<8x32xf32>
    %174 = arith.subf %173, %167 : vector<8x32xf32>
    %175 = arith.mulf %174, %172 : vector<8x32xf32>
    %176 = arith.mulf %167, %145 : vector<8x32xf32>
    %177 = arith.addf %175, %176 : vector<8x32xf32>
    %c32 = arith.constant 32 : index
    %c0_46 = arith.constant 0 : index
    %178 = vector.load %arg12[%c32, %c0_46] : memref<64x32xf32, #tpu.memory_space<vmem>>, vector<8x32xf32>
    tpu.vector_store %arg12[%c32, %c0_46], %177 {strides = array<i32>} : memref<64x32xf32, #tpu.memory_space<vmem>>, vector<8x32xf32>,
    %179 = vector.extract_strided_slice %17 {offsets = [40, 0], sizes = [8, 96], strides = [1, 1]} : vector<64x96xf32> to vector<8x96xf32>
    %180 = arith.truncf %177 : vector<8x32xf32> to vector<8x32xbf16>
    %cst_47 = arith.constant dense<0.000000e+00> : vector<8x96xf32>
    %181 = tpu.matmul %180, %3, %cst_47 {dimension_numbers = #tpu.dot_dimension_numbers<[1], [0], [0], [1], [0, 0, 1, 1], [], []>} : vector<8x32xbf16>, vector<32x96xbf16>, vector<8x96xf32> -> vector<8x96xf32>
    %182 = vector.broadcast %5 : vector<1x96xf32> to vector<8x96xf32>
    %183 = arith.addf %181, %182 : vector<8x96xf32>
    %184 = vector.extract_strided_slice %179 {offsets = [0, 0], sizes = [8, 32], strides = [1, 1]} : vector<8x96xf32> to vector<8x32xf32>
    %185 = vector.extract_strided_slice %183 {offsets = [0, 0], sizes = [8, 32], strides = [1, 1]} : vector<8x96xf32> to vector<8x32xf32>
    %186 = arith.addf %184, %185 : vector<8x32xf32>
    %187 = arith.negf %186 : vector<8x32xf32>
    %188 = math.exp %187 : vector<8x32xf32>
    %cst_48 = arith.constant 1.000000e+00 : f32
    %189 = vector.broadcast %cst_48 : f32 to vector<8x32xf32>
    %190 = arith.addf %189, %188 : vector<8x32xf32>
    %191 = arith.divf %189, %190 : vector<8x32xf32>
    %192 = vector.extract_strided_slice %179 {offsets = [0, 32], sizes = [8, 32], strides = [1, 1]} : vector<8x96xf32> to vector<8x32xf32>
    %193 = vector.extract_strided_slice %183 {offsets = [0, 32], sizes = [8, 32], strides = [1, 1]} : vector<8x96xf32> to vector<8x32xf32>
    %194 = arith.addf %192, %193 : vector<8x32xf32>
    %195 = arith.negf %194 : vector<8x32xf32>
    %196 = math.exp %195 : vector<8x32xf32>
    %cst_49 = arith.constant 1.000000e+00 : f32
    %197 = vector.broadcast %cst_49 : f32 to vector<8x32xf32>
    %198 = arith.addf %197, %196 : vector<8x32xf32>
    %199 = arith.divf %197, %198 : vector<8x32xf32>
    %200 = vector.extract_strided_slice %179 {offsets = [0, 64], sizes = [8, 32], strides = [1, 1]} : vector<8x96xf32> to vector<8x32xf32>
    %201 = vector.extract_strided_slice %183 {offsets = [0, 64], sizes = [8, 32], strides = [1, 1]} : vector<8x96xf32> to vector<8x32xf32>
    %202 = arith.mulf %191, %201 : vector<8x32xf32>
    %203 = arith.addf %200, %202 : vector<8x32xf32>
    %204 = math.tanh %203 : vector<8x32xf32>
    %cst_50 = arith.constant 1.000000e+00 : f32
    %205 = vector.broadcast %cst_50 : f32 to vector<8x32xf32>
    %206 = arith.subf %205, %199 : vector<8x32xf32>
    %207 = arith.mulf %206, %204 : vector<8x32xf32>
    %208 = arith.mulf %199, %177 : vector<8x32xf32>
    %209 = arith.addf %207, %208 : vector<8x32xf32>
    %c40 = arith.constant 40 : index
    %c0_51 = arith.constant 0 : index
    %210 = vector.load %arg12[%c40, %c0_51] : memref<64x32xf32, #tpu.memory_space<vmem>>, vector<8x32xf32>
    tpu.vector_store %arg12[%c40, %c0_51], %209 {strides = array<i32>} : memref<64x32xf32, #tpu.memory_space<vmem>>, vector<8x32xf32>,
    %211 = vector.extract_strided_slice %17 {offsets = [48, 0], sizes = [8, 96], strides = [1, 1]} : vector<64x96xf32> to vector<8x96xf32>
    %212 = arith.truncf %209 : vector<8x32xf32> to vector<8x32xbf16>
    %cst_52 = arith.constant dense<0.000000e+00> : vector<8x96xf32>
    %213 = tpu.matmul %212, %3, %cst_52 {dimension_numbers = #tpu.dot_dimension_numbers<[1], [0], [0], [1], [0, 0, 1, 1], [], []>} : vector<8x32xbf16>, vector<32x96xbf16>, vector<8x96xf32> -> vector<8x96xf32>
    %214 = vector.broadcast %5 : vector<1x96xf32> to vector<8x96xf32>
    %215 = arith.addf %213, %214 : vector<8x96xf32>
    %216 = vector.extract_strided_slice %211 {offsets = [0, 0], sizes = [8, 32], strides = [1, 1]} : vector<8x96xf32> to vector<8x32xf32>
    %217 = vector.extract_strided_slice %215 {offsets = [0, 0], sizes = [8, 32], strides = [1, 1]} : vector<8x96xf32> to vector<8x32xf32>
    %218 = arith.addf %216, %217 : vector<8x32xf32>
    %219 = arith.negf %218 : vector<8x32xf32>
    %220 = math.exp %219 : vector<8x32xf32>
    %cst_53 = arith.constant 1.000000e+00 : f32
    %221 = vector.broadcast %cst_53 : f32 to vector<8x32xf32>
    %222 = arith.addf %221, %220 : vector<8x32xf32>
    %223 = arith.divf %221, %222 : vector<8x32xf32>
    %224 = vector.extract_strided_slice %211 {offsets = [0, 32], sizes = [8, 32], strides = [1, 1]} : vector<8x96xf32> to vector<8x32xf32>
    %225 = vector.extract_strided_slice %215 {offsets = [0, 32], sizes = [8, 32], strides = [1, 1]} : vector<8x96xf32> to vector<8x32xf32>
    %226 = arith.addf %224, %225 : vector<8x32xf32>
    %227 = arith.negf %226 : vector<8x32xf32>
    %228 = math.exp %227 : vector<8x32xf32>
    %cst_54 = arith.constant 1.000000e+00 : f32
    %229 = vector.broadcast %cst_54 : f32 to vector<8x32xf32>
    %230 = arith.addf %229, %228 : vector<8x32xf32>
    %231 = arith.divf %229, %230 : vector<8x32xf32>
    %232 = vector.extract_strided_slice %211 {offsets = [0, 64], sizes = [8, 32], strides = [1, 1]} : vector<8x96xf32> to vector<8x32xf32>
    %233 = vector.extract_strided_slice %215 {offsets = [0, 64], sizes = [8, 32], strides = [1, 1]} : vector<8x96xf32> to vector<8x32xf32>
    %234 = arith.mulf %223, %233 : vector<8x32xf32>
    %235 = arith.addf %232, %234 : vector<8x32xf32>
    %236 = math.tanh %235 : vector<8x32xf32>
    %cst_55 = arith.constant 1.000000e+00 : f32
    %237 = vector.broadcast %cst_55 : f32 to vector<8x32xf32>
    %238 = arith.subf %237, %231 : vector<8x32xf32>
    %239 = arith.mulf %238, %236 : vector<8x32xf32>
    %240 = arith.mulf %231, %209 : vector<8x32xf32>
    %241 = arith.addf %239, %240 : vector<8x32xf32>
    %c48 = arith.constant 48 : index
    %c0_56 = arith.constant 0 : index
    %242 = vector.load %arg12[%c48, %c0_56] : memref<64x32xf32, #tpu.memory_space<vmem>>, vector<8x32xf32>
    tpu.vector_store %arg12[%c48, %c0_56], %241 {strides = array<i32>} : memref<64x32xf32, #tpu.memory_space<vmem>>, vector<8x32xf32>,
    %243 = vector.extract_strided_slice %17 {offsets = [56, 0], sizes = [8, 96], strides = [1, 1]} : vector<64x96xf32> to vector<8x96xf32>
    %244 = arith.truncf %241 : vector<8x32xf32> to vector<8x32xbf16>
    %cst_57 = arith.constant dense<0.000000e+00> : vector<8x96xf32>
    %245 = tpu.matmul %244, %3, %cst_57 {dimension_numbers = #tpu.dot_dimension_numbers<[1], [0], [0], [1], [0, 0, 1, 1], [], []>} : vector<8x32xbf16>, vector<32x96xbf16>, vector<8x96xf32> -> vector<8x96xf32>
    %246 = vector.broadcast %5 : vector<1x96xf32> to vector<8x96xf32>
    %247 = arith.addf %245, %246 : vector<8x96xf32>
    %248 = vector.extract_strided_slice %243 {offsets = [0, 0], sizes = [8, 32], strides = [1, 1]} : vector<8x96xf32> to vector<8x32xf32>
    %249 = vector.extract_strided_slice %247 {offsets = [0, 0], sizes = [8, 32], strides = [1, 1]} : vector<8x96xf32> to vector<8x32xf32>
    %250 = arith.addf %248, %249 : vector<8x32xf32>
    %251 = arith.negf %250 : vector<8x32xf32>
    %252 = math.exp %251 : vector<8x32xf32>
    %cst_58 = arith.constant 1.000000e+00 : f32
    %253 = vector.broadcast %cst_58 : f32 to vector<8x32xf32>
    %254 = arith.addf %253, %252 : vector<8x32xf32>
    %255 = arith.divf %253, %254 : vector<8x32xf32>
    %256 = vector.extract_strided_slice %243 {offsets = [0, 32], sizes = [8, 32], strides = [1, 1]} : vector<8x96xf32> to vector<8x32xf32>
    %257 = vector.extract_strided_slice %247 {offsets = [0, 32], sizes = [8, 32], strides = [1, 1]} : vector<8x96xf32> to vector<8x32xf32>
    %258 = arith.addf %256, %257 : vector<8x32xf32>
    %259 = arith.negf %258 : vector<8x32xf32>
    %260 = math.exp %259 : vector<8x32xf32>
    %cst_59 = arith.constant 1.000000e+00 : f32
    %261 = vector.broadcast %cst_59 : f32 to vector<8x32xf32>
    %262 = arith.addf %261, %260 : vector<8x32xf32>
    %263 = arith.divf %261, %262 : vector<8x32xf32>
    %264 = vector.extract_strided_slice %243 {offsets = [0, 64], sizes = [8, 32], strides = [1, 1]} : vector<8x96xf32> to vector<8x32xf32>
    %265 = vector.extract_strided_slice %247 {offsets = [0, 64], sizes = [8, 32], strides = [1, 1]} : vector<8x96xf32> to vector<8x32xf32>
    %266 = arith.mulf %255, %265 : vector<8x32xf32>
    %267 = arith.addf %264, %266 : vector<8x32xf32>
    %268 = math.tanh %267 : vector<8x32xf32>
    %cst_60 = arith.constant 1.000000e+00 : f32
    %269 = vector.broadcast %cst_60 : f32 to vector<8x32xf32>
    %270 = arith.subf %269, %263 : vector<8x32xf32>
    %271 = arith.mulf %270, %268 : vector<8x32xf32>
    %272 = arith.mulf %263, %241 : vector<8x32xf32>
    %273 = arith.addf %271, %272 : vector<8x32xf32>
    %c56 = arith.constant 56 : index
    %c0_61 = arith.constant 0 : index
    %274 = vector.load %arg12[%c56, %c0_61] : memref<64x32xf32, #tpu.memory_space<vmem>>, vector<8x32xf32>
    tpu.vector_store %arg12[%c56, %c0_61], %273 {strides = array<i32>} : memref<64x32xf32, #tpu.memory_space<vmem>>, vector<8x32xf32>,
    %c0_62 = arith.constant 0 : index
    %c0_63 = arith.constant 0 : index
    %275 = vector.load %arg11[%c0_62, %c0_63] : memref<8x32xf32, #tpu.memory_space<vmem>>, vector<8x32xf32>
    tpu.vector_store %arg11[%c0_62, %c0_63], %273 {strides = array<i32>} : memref<8x32xf32, #tpu.memory_space<vmem>>, vector<8x32xf32>,
    %c0_64 = arith.constant 0 : index
    %c0_65 = arith.constant 0 : index
    %276 = vector.load %arg12[%c0_64, %c0_65] : memref<64x32xf32, #tpu.memory_space<vmem>>, vector<64x32xf32>
    %277 = arith.truncf %276 : vector<64x32xf32> to vector<64x32xbf16>
    %cst_66 = arith.constant dense<0.000000e+00> : vector<64x8xf32>
    %278 = tpu.matmul %277, %6, %cst_66 {dimension_numbers = #tpu.dot_dimension_numbers<[1], [0], [0], [1], [0, 0, 1, 1], [], []>} : vector<64x32xbf16>, vector<32x8xbf16>, vector<64x8xf32> -> vector<64x8xf32>
    %279 = vector.broadcast %7 : vector<1x8xf32> to vector<64x8xf32>
    %280 = arith.addf %278, %279 : vector<64x8xf32>
    %c0_67 = arith.constant 0 : index
    %c0_68 = arith.constant 0 : index
    %281 = vector.load %arg10[%c0_67, %c0_68] : memref<64x8xf32, #tpu.memory_space<vmem>>, vector<64x8xf32>
    tpu.vector_store %arg10[%c0_67, %c0_68], %280 {strides = array<i32>} : memref<64x8xf32, #tpu.memory_space<vmem>>, vector<64x8xf32>,
    return
  }
}

</mosaic_0001>

<llo_original>
// kernel: tpu_custom_call.1
$region0: #{tpu_custom_call.1}
  #allocation0 [shape = 'u32[]', space=smem, size = 0x4, offset = 0x4, fixed_abs, tag = 'smem constant byte address 0x4 - core index']
  #allocation1 [shape = 'u32[144,128]{1,0:T(1,128)}', space=vmem, size = 0x12000, scoped, tag = 'internal scratch']
  #allocation2 [shape = 'f32[64,32]{1,0:T(8,128)}', space=vmem, size = 0x8000, scoped, tag = 'scratch operand']
  %s0 = inlined_call_operand.vmem [shape: bf16[64,32], index: 0, kind: input, shape index: {}]
  %s1 = inlined_call_operand.hbm [shape: f32[8,32], index: 1, kind: input, shape index: {}]
  %s2 = inlined_call_operand.vmem [shape: bf16[32,32], index: 2, kind: input, shape index: {}]
  %s3 = inlined_call_operand.vmem [shape: f32[1,32], index: 3, kind: input, shape index: {}]
  %s4 = inlined_call_operand.vmem [shape: bf16[32,96], index: 4, kind: input, shape index: {}]
  %s5 = inlined_call_operand.vmem [shape: bf16[32,96], index: 5, kind: input, shape index: {}]
  %s6 = inlined_call_operand.vmem [shape: f32[1,96], index: 6, kind: input, shape index: {}]
  %s7 = inlined_call_operand.vmem [shape: f32[1,96], index: 7, kind: input, shape index: {}]
  %s8 = inlined_call_operand.vmem [shape: bf16[32,8], index: 8, kind: input, shape index: {}]
  %s9 = inlined_call_operand.vmem [shape: f32[1,8], index: 9, kind: input, shape index: {}]
  %s10 = inlined_call_operand.vmem [shape: f32[64,8], index: 10, kind: output, shape index: {0}]
  %s11 = inlined_call_operand.hbm [shape: f32[8,32], index: 11, kind: output, shape index: {1}]
  %12 = xla_tuple %s10, %s11
  %s13 = sld [smem:[#allocation0]]
  $region62: #{tpu_custom_call.1} parent=0
    _
  %s15 = ssub.s32 1, %s13
  %s16 = scalar_select 0, %s15, %s13
  $region1: #{tpu_custom_call.1} parent=0
    #allocation3 [shape = 'u8[4096]{0}', space=vmem, size = 0x1000, scoped, tag = 'input window, operand 1, single buffered']
    #allocation4 [shape = 's32[1]{0}', space=sflag, size = 0x4, scoped, tag = 'scoped memory for tpu_custom_call.1']
    #allocation5 [shape = 's32[1]{0}', space=sflag, size = 0x4, scoped, tag = 'scoped memory for tpu_custom_call.1']
    #allocation6 [shape = 'u8[4096]{0}', space=vmem, size = 0x1000, scoped, tag = 'output window, operand 1, single buffered']
    %17 = vsyncpa [#allocation4], 0
    %18 = vsyncpa [#allocation5], 0
    // Predicated region
    $region2: #{tpu_custom_call.1} parent=1 // pred_check
      _
    $region3: #{tpu_custom_call.1} parent=1 // pred_check_branch
      %20 = sbr.rel (0) target = $region5
    $region4: #{tpu_custom_call.1} parent=1 // pred_region
      _
    $region5: #{tpu_custom_call.1} parent=1 // pred_fallthru
      _
    // Predicated region
    $region6: #{tpu_custom_call.1} parent=1 // pred_check
      _
    $region7: #{tpu_custom_call.1} parent=1 // pred_check_branch
      %22 = sbr.rel (0) target = $region9
    $region8: #{tpu_custom_call.1} parent=1 // pred_region
      %s24 = ssub.s32 128, 128
      %25 = vsyncadd [#allocation4], %s24
      %s27 = sshll.u32 [#allocation3], 4
      %s28 = int_to_ptr.vmem [resolvable:$true] %s27
      %30 = dma.hbm_to_vmem [thread:$0]  %s1, 128, %s28, [#allocation4]
    $region9: #{tpu_custom_call.1} parent=1 // pred_fallthru
      _
    // Predicated region
    $region10: #{tpu_custom_call.1} parent=1 // pred_check
      _
    $region11: #{tpu_custom_call.1} parent=1 // pred_check_branch
      %32 = sbr.rel (0) target = $region13
    $region12: #{tpu_custom_call.1} parent=1 // pred_region
      _
    $region13: #{tpu_custom_call.1} parent=1 // pred_fallthru
      _
    // Predicated region
    $region14: #{tpu_custom_call.1} parent=1 // pred_check
      _
    $region15: #{tpu_custom_call.1} parent=1 // pred_check_branch
      %34 = sbr.rel (0) target = $region17
    $region16: #{tpu_custom_call.1} parent=1 // pred_region
      _
    $region17: #{tpu_custom_call.1} parent=1 // pred_fallthru
      _
    // Predicated region
    $region18: #{tpu_custom_call.1} parent=1 // pred_check
      _
    $region19: #{tpu_custom_call.1} parent=1 // pred_check_branch
      %36 = sbr.rel (0) target = $region21
    $region20: #{tpu_custom_call.1} parent=1 // pred_region
      _
    $region21: #{tpu_custom_call.1} parent=1 // pred_fallthru
      _
    // Predicated region
    $region22: #{tpu_custom_call.1} parent=1 // pred_check
      _
    $region23: #{tpu_custom_call.1} parent=1 // pred_check_branch
      %38 = sbr.rel (0) target = $region25
    $region24: #{tpu_custom_call.1} parent=1 // pred_region
      _
    $region25: #{tpu_custom_call.1} parent=1 // pred_fallthru
      _
    // Predicated region
    $region26: #{tpu_custom_call.1} parent=1 // pred_check
      _
    $region27: #{tpu_custom_call.1} parent=1 // pred_check_branch
      %40 = sbr.rel (0) target = $region29
    $region28: #{tpu_custom_call.1} parent=1 // pred_region
      _
    $region29: #{tpu_custom_call.1} parent=1 // pred_fallthru
      _
    // Predicated region
    $region30: #{tpu_custom_call.1} parent=1 // pred_check
      _
    $region31: #{tpu_custom_call.1} parent=1 // pred_check_branch
      %42 = sbr.rel (0) target = $region33
    $region32: #{tpu_custom_call.1} parent=1 // pred_region
      _
    $region33: #{tpu_custom_call.1} parent=1 // pred_fallthru
      _
    // Predicated region
    $region34: #{tpu_custom_call.1} parent=1 // pred_check
      _
    $region35: #{tpu_custom_call.1} parent=1 // pred_check_branch
      %44 = sbr.rel (0) target = $region37
    $region36: #{tpu_custom_call.1} parent=1 // pred_region
      _
    $region37: #{tpu_custom_call.1} parent=1 // pred_fallthru
      _
    // Predicated region
    $region38: #{tpu_custom_call.1} parent=1 // pred_check
      _
    $region39: #{tpu_custom_call.1} parent=1 // pred_check_branch
      %46 = sbr.rel (0) target = $region41
    $region40: #{tpu_custom_call.1} parent=1 // pred_region
      _
    $region41: #{tpu_custom_call.1} parent=1 // pred_fallthru
      _
    // Predicated region
    $region42: #{tpu_custom_call.1} parent=1 // pred_check
      _
    $region43: #{tpu_custom_call.1} parent=1 // pred_check_branch
      %48 = sbr.rel (0) target = $region45
    $region44: #{tpu_custom_call.1} parent=1 // pred_region
      %49 = dma.done [#allocation4], 128
    $region45: #{tpu_custom_call.1} parent=1 // pred_fallthru
      _
    %v51 = vld [vmem:[%s2] sm:$0xf]
    %v52 = vld [vmem:[%s2 + $0x4] sm:$0xf]
    %v53 = vld [vmem:[%s2 + $0x8] sm:$0xf]
    %v54 = vld [vmem:[%s2 + $0xc] sm:$0xf]
    %v55 = vld [vmem:[%s3] sm:$0x1]
    %v56 = vld [vmem:[%s4] sm:$0xf]
    %v57 = vld [vmem:[%s4 + $0x4] sm:$0xf]
    %v58 = vld [vmem:[%s4 + $0x8] sm:$0xf]
    %v59 = vld [vmem:[%s4 + $0xc] sm:$0xf]
    %v60 = vld [vmem:[%s5] sm:$0xf]
    %v61 = vld [vmem:[%s5 + $0x4] sm:$0xf]
    %v62 = vld [vmem:[%s5 + $0x8] sm:$0xf]
    %v63 = vld [vmem:[%s5 + $0xc] sm:$0xf]
    %v64 = vld [vmem:[%s6] sm:$0x1]
    %v65 = vld [vmem:[%s7] sm:$0x1]
    %v66 = vld [vmem:[%s8] sm:$0xf]
    %v67 = vld [vmem:[%s8 + $0x4] sm:$0xf]
    %v68 = vld [vmem:[%s8 + $0x8] sm:$0xf]
    %v69 = vld [vmem:[%s8 + $0xc] sm:$0xf]
    %v70 = vld [vmem:[%s9] sm:$0x1]
    %v71 = vld [vmem:[%s0] sm:$0xf]
    %v72 = vld [vmem:[%s0 + $0x4] sm:$0xf]
    %v73 = vld [vmem:[%s0 + $0x8] sm:$0xf]
    %v74 = vld [vmem:[%s0 + $0xc] sm:$0xf]
    %v75 = vld [vmem:[%s0 + $0x10] sm:$0xf]
    %v76 = vld [vmem:[%s0 + $0x14] sm:$0xf]
    %v77 = vld [vmem:[%s0 + $0x18] sm:$0xf]
    %v78 = vld [vmem:[%s0 + $0x1c] sm:$0xf]
    %v80 = vlaneseq
    %v81 = vshrl.u32 %v80, 7
    %v82 = vsub.s32 0, %v81
    %v83 = vrot.slane %v55, %v82
    %v93 = vunpack.c.l.b16 %v71
    %v94 = vunpack.c.l.b16 %v72
    %v95 = vunpack.c.l.b16 %v73
    %v96 = vunpack.c.l.b16 %v74
    %v97 = vunpack.c.l.b16 %v75
    %v98 = vunpack.c.l.b16 %v76
    %v99 = vunpack.c.l.b16 %v77
    %v100 = vunpack.c.l.b16 %v78
    %v101 = vpack.c.b16 %v94, %v93
    %v102 = vpack.c.b16 %v96, %v95
    %v103 = vpack.c.b16 %v98, %v97
    %v104 = vpack.c.b16 %v100, %v99
    %v109 = vunpack.c.l.b16 %v51
    %v110 = vunpack.c.l.b16 %v52
    %v111 = vunpack.c.l.b16 %v53
    %v112 = vunpack.c.l.b16 %v54
    %v113 = vpack.c.b16 %v110, %v109
    %v114 = vpack.c.b16 %v112, %v111
    %vm117 = vcmask 261120
    %v119 = vsel %vm117, %v101, 0
    %v122 = vsel %vm117, %v102, 0
    %v125 = vsel %vm117, %v103, 0
    %v128 = vsel %vm117, %v104, 0
    %130 = vmatprep.subr.bf16.mxu0 0
    %131 = vmatpush1.bf16.msra.mxu0 0
    %132 = vmatprep.subr.bf16.mxu0 0
    %133 = vmatpush1.bf16.msra.mxu0 0
    %134 = vmatprep.subr.bf16.mxu0 0
    %135 = vmatpush1.bf16.msra.mxu0 0
    %136 = vmatprep.subr.bf16.mxu0 0
    %137 = vmatpush1.bf16.msra.mxu0 0
    %138 = vmatprep.subr.bf16.mxu0 0
    %139 = vmatpush1.bf16.msra.mxu0 0
    %140 = vmatprep.subr.bf16.mxu0 0
    %141 = vmatpush1.bf16.msra.mxu0 0
    %142 = vmatprep.subr.bf16.mxu0 0
    %143 = vmatpush1.bf16.msra.mxu0 %v114
    %144 = vmatprep.subr.bf16.mxu0 0
    %145 = vmatpush1.bf16.msra.mxu0 %v113
    %146 = vmatprep.subr.bf16.mxu0 0
    %147 = vmatpush2.bf16.msra.mxu0 0
    %148 = vmatprep.subr.bf16.mxu0 0
    %149 = vmatpush2.bf16.msra.mxu0 0
    %150 = vmatprep.subr.bf16.mxu0 0
    %151 = vmatpush2.bf16.msra.mxu0 0
    %152 = vmatprep.subr.bf16.mxu0 0
    %153 = vmatpush2.bf16.msra.mxu0 0
    %154 = vmatprep.subr.bf16.mxu0 0
    %155 = vmatpush2.bf16.msra.mxu0 0
    %156 = vmatprep.subr.bf16.mxu0 0
    %157 = vmatpush2.bf16.msra.mxu0 0
    %158 = vmatprep.subr.bf16.mxu0 0
    %159 = vmatpush2.bf16.msra.mxu0 0
    %160 = vmatprep.subr.bf16.mxu0 0
    %161 = vmatpush2.bf16.msra.mxu0 0
    %162 = vmatprep.mubr.bf16.mxu0 0
    %163 = vmatmul.mubr.bf16.gmra.mxu0 %v119
    %v164 = vpop.f32.mrf.mxu0
    %v165 = vadd.f32 %v83, %v164
    %v166 = vpop.f32.mrf.mxu0
    %v167 = vpop.f32.mrf.mxu0
    %v168 = vadd.f32 %v83, %v167
    %v169 = vpop.f32.mrf.mxu0
    %170 = vmatprep.mubr.bf16.mxu0 0
    %171 = vmatmul.mubr.bf16.gmra.mxu0 %v122
    %v172 = vpop.f32.mrf.mxu0
    %v173 = vadd.f32 %v83, %v172
    %v174 = vpop.f32.mrf.mxu0
    %v175 = vpop.f32.mrf.mxu0
    %v176 = vadd.f32 %v83, %v175
    %v177 = vpop.f32.mrf.mxu0
    %178 = vmatprep.mubr.bf16.mxu0 0
    %179 = vmatmul.mubr.bf16.gmra.mxu0 %v125
    %v180 = vpop.f32.mrf.mxu0
    %v181 = vadd.f32 %v83, %v180
    %v182 = vpop.f32.mrf.mxu0
    %v183 = vpop.f32.mrf.mxu0
    %v184 = vadd.f32 %v83, %v183
    %v185 = vpop.f32.mrf.mxu0
    %186 = vmatprep.mubr.bf16.mxu0 0
    %187 = vmatmul.mubr.bf16.gmra.mxu0 %v128
    %v188 = vpop.f32.mrf.mxu0
    %v189 = vadd.f32 %v83, %v188
    %v190 = vpop.f32.mrf.mxu0
    %v191 = vpop.f32.mrf.mxu0
    %v192 = vadd.f32 %v83, %v191
    %v193 = vpop.f32.mrf.mxu0
    %194 = vdwg.mxu0
    %v195 = vmax.f32 %v165, 0.0
    %v196 = vmax.f32 %v168, 0.0
    %v197 = vmax.f32 %v173, 0.0
    %v198 = vmax.f32 %v176, 0.0
    %v199 = vmax.f32 %v181, 0.0
    %v200 = vmax.f32 %v184, 0.0
    %v201 = vmax.f32 %v189, 0.0
    %v202 = vmax.f32 %v192, 0.0
    %v203 = vpack.c.bf16 %v196, %v195
    %v204 = vpack.c.bf16 %v198, %v197
    %v205 = vpack.c.bf16 %v200, %v199
    %v206 = vpack.c.bf16 %v202, %v201
    %v208 = vlaneseq
    %v209 = vshrl.u32 %v208, 7
    %v210 = vsub.s32 0, %v209
    %v211 = vrot.slane %v64, %v210
    %v217 = vunpack.c.l.b16 %v56
    %v218 = vunpack.c.l.b16 %v57
    %v219 = vunpack.c.l.b16 %v58
    %v220 = vunpack.c.l.b16 %v59
    %v221 = vpack.c.b16 %v218, %v217
    %v222 = vpack.c.b16 %v220, %v219
    %v226 = vsel %vm117, %v203, 0
    %v229 = vsel %vm117, %v204, 0
    %v232 = vsel %vm117, %v205, 0
    %v235 = vsel %vm117, %v206, 0
    %237 = vmatprep.subr.bf16.mxu0 0
    %238 = vmatpush1.bf16.msra.mxu0 0
    %239 = vmatprep.subr.bf16.mxu0 0
    %240 = vmatpush1.bf16.msra.mxu0 0
    %241 = vmatprep.subr.bf16.mxu0 0
    %242 = vmatpush1.bf16.msra.mxu0 0
    %243 = vmatprep.subr.bf16.mxu0 0
    %244 = vmatpush1.bf16.msra.mxu0 0
    %245 = vmatprep.subr.bf16.mxu0 0
    %246 = vmatpush1.bf16.msra.mxu0 0
    %247 = vmatprep.subr.bf16.mxu0 0
    %248 = vmatpush1.bf16.msra.mxu0 0
    %249 = vmatprep.subr.bf16.mxu0 0
    %250 = vmatpush1.bf16.msra.mxu0 %v222
    %251 = vmatprep.subr.bf16.mxu0 0
    %252 = vmatpush1.bf16.msra.mxu0 %v221
    %253 = vmatprep.subr.bf16.mxu0 0
    %254 = vmatpush2.bf16.msra.mxu0 0
    %255 = vmatprep.subr.bf16.mxu0 0
    %256 = vmatpush2.bf16.msra.mxu0 0
    %257 = vmatprep.subr.bf16.mxu0 0
    %258 = vmatpush2.bf16.msra.mxu0 0
    %259 = vmatprep.subr.bf16.mxu0 0
    %260 = vmatpush2.bf16.msra.mxu0 0
    %261 = vmatprep.subr.bf16.mxu0 0
    %262 = vmatpush2.bf16.msra.mxu0 0
    %263 = vmatprep.subr.bf16.mxu0 0
    %264 = vmatpush2.bf16.msra.mxu0 0
    %265 = vmatprep.subr.bf16.mxu0 0
    %266 = vmatpush2.bf16.msra.mxu0 0
    %267 = vmatprep.subr.bf16.mxu0 0
    %268 = vmatpush2.bf16.msra.mxu0 0
    %269 = vmatprep.mubr.bf16.mxu0 0
    %270 = vmatmul.mubr.bf16.gmra.mxu0 %v226
    %v271 = vpop.f32.mrf.mxu0
    %v272 = vadd.f32 %v211, %v271
    %v273 = vpop.f32.mrf.mxu0
    %v274 = vpop.f32.mrf.mxu0
    %v275 = vadd.f32 %v211, %v274
    %v276 = vpop.f32.mrf.mxu0
    %277 = vmatprep.mubr.bf16.mxu0 0
    %278 = vmatmul.mubr.bf16.gmra.mxu0 %v229
    %v279 = vpop.f32.mrf.mxu0
    %v280 = vadd.f32 %v211, %v279
    %v281 = vpop.f32.mrf.mxu0
    %v282 = vpop.f32.mrf.mxu0
    %v283 = vadd.f32 %v211, %v282
    %v284 = vpop.f32.mrf.mxu0
    %285 = vmatprep.mubr.bf16.mxu0 0
    %286 = vmatmul.mubr.bf16.gmra.mxu0 %v232
    %v287 = vpop.f32.mrf.mxu0
    %v288 = vadd.f32 %v211, %v287
    %v289 = vpop.f32.mrf.mxu0
    %v290 = vpop.f32.mrf.mxu0
    %v291 = vadd.f32 %v211, %v290
    %v292 = vpop.f32.mrf.mxu0
    %293 = vmatprep.mubr.bf16.mxu0 0
    %294 = vmatmul.mubr.bf16.gmra.mxu0 %v235
    %v295 = vpop.f32.mrf.mxu0
    %v296 = vadd.f32 %v211, %v295
    %v297 = vpop.f32.mrf.mxu0
    %v298 = vpop.f32.mrf.mxu0
    %v299 = vadd.f32 %v211, %v298
    %v300 = vpop.f32.mrf.mxu0
    %301 = vdwg.mxu0
    %v302 = vld [vmem:[#allocation3] sm:$0xff]
    %v303 = vpack.c.bf16 %v302, %v302
    %v305 = vlaneseq
    %v306 = vshrl.u32 %v305, 7
    %v307 = vsub.s32 0, %v306
    %v308 = vrot.slane %v65, %v307
    %v314 = vunpack.c.l.b16 %v60
    %v315 = vunpack.c.l.b16 %v61
    %v316 = vunpack.c.l.b16 %v62
    %v317 = vunpack.c.l.b16 %v63
    %v318 = vpack.c.b16 %v315, %v314
    %v319 = vpack.c.b16 %v317, %v316
    %v323 = vsel %vm117, %v303, 0
    %325 = vmatprep.subr.bf16.mxu0 0
    %326 = vmatpush1.bf16.msra.mxu0 0
    %327 = vmatprep.subr.bf16.mxu0 0
    %328 = vmatpush1.bf16.msra.mxu0 0
    %329 = vmatprep.subr.bf16.mxu0 0
    %330 = vmatpush1.bf16.msra.mxu0 0
    %331 = vmatprep.subr.bf16.mxu0 0
    %332 = vmatpush1.bf16.msra.mxu0 0
    %333 = vmatprep.subr.bf16.mxu0 0
    %334 = vmatpush1.bf16.msra.mxu0 0
    %335 = vmatprep.subr.bf16.mxu0 0
    %336 = vmatpush1.bf16.msra.mxu0 0
    %337 = vmatprep.subr.bf16.mxu0 0
    %338 = vmatpush1.bf16.msra.mxu0 %v319
    %339 = vmatprep.subr.bf16.mxu0 0
    %340 = vmatpush1.bf16.msra.mxu0 %v318
    %341 = vmatprep.subr.bf16.mxu0 0
    %342 = vmatpush2.bf16.msra.mxu0 0
    %343 = vmatprep.subr.bf16.mxu0 0
    %344 = vmatpush2.bf16.msra.mxu0 0
    %345 = vmatprep.subr.bf16.mxu0 0
    %346 = vmatpush2.bf16.msra.mxu0 0
    %347 = vmatprep.subr.bf16.mxu0 0
    %348 = vmatpush2.bf16.msra.mxu0 0
    %349 = vmatprep.subr.bf16.mxu0 0
    %350 = vmatpush2.bf16.msra.mxu0 0
    %351 = vmatprep.subr.bf16.mxu0 0
    %352 = vmatpush2.bf16.msra.mxu0 0
    %353 = vmatprep.subr.bf16.mxu0 0
    %354 = vmatpush2.bf16.msra.mxu0 0
    %355 = vmatprep.subr.bf16.mxu0 0
    %356 = vmatpush2.bf16.msra.mxu0 0
    %357 = vmatprep.mubr.bf16.mxu0 0
    %358 = vmatmul.mubr.bf16.gmra.mxu0 %v323
    %v359 = vpop.f32.mrf.mxu0
    %v360 = vadd.f32 %v308, %v359
    %v361 = vpop.f32.mrf.mxu0
    %v362 = vpop.f32.mrf.mxu0
    %v363 = vpop.f32.mrf.mxu0
    %364 = vdwg.mxu0
    %v365 = vadd.f32 %v272, %v360
    %v366 = vxor.u32 %v365, 2147483648
    %v367 = vmul.f32 %v366, 1.442695
    %v368 = vpow.pop %v367
    %v369 = vadd.f32 %v368, 1.0
    %v370 = vrcp.pop %v369
    %v371 = vmul.f32 1.0, %v370
    %373 = vrot.lane.b32.xlu0 %v360, 64
    %v374 = vpop.permute.xlu0 %373
    %v376 = vmul.f32 %v371, %v374
    %378 = vrot.lane.b32.xlu0 %v376, 64
    %v379 = vpop.permute.xlu0 %378
    %v381 = vadd.f32 %v272, %v379
    %v382 = vtanh.pop %v381
    %v383 = vsub.f32 1.0, %v371
    %385 = vrot.lane.b32.xlu0 %v382, 96
    %v386 = vpop.permute.xlu0 %385
    %v388 = vmul.f32 %v383, %v386
    %390 = vrot.lane.b32.xlu0 %v302, 32
    %v391 = vpop.permute.xlu0 %390
    %v393 = vmul.f32 %v371, %v391
    %v394 = vadd.f32 %v388, %v393
    %396 = vrot.lane.b32.xlu0 %v394, 96
    %v397 = vpop.permute.xlu0 %396
    %399 = vst.msk [vmem:[#allocation2] sm:$0xff] %vm117, %v397
    %v400 = vpack.c.bf16 %v394, %v394
    %402 = vrot.lane.b32.xlu0 %v400, 96
    %v403 = vpop.permute.xlu0 %402
    %v405 = vsel %vm117, %v403, 0
    %407 = vmatprep.subr.bf16.mxu0 0
    %408 = vmatpush1.bf16.msra.mxu0 0
    %409 = vmatprep.subr.bf16.mxu0 0
    %410 = vmatpush1.bf16.msra.mxu0 0
    %411 = vmatprep.subr.bf16.mxu0 0
    %412 = vmatpush1.bf16.msra.mxu0 0
    %413 = vmatprep.subr.bf16.mxu0 0
    %414 = vmatpush1.bf16.msra.mxu0 0
    %415 = vmatprep.subr.bf16.mxu0 0
    %416 = vmatpush1.bf16.msra.mxu0 0
    %417 = vmatprep.subr.bf16.mxu0 0
    %418 = vmatpush1.bf16.msra.mxu0 0
    %419 = vmatprep.subr.bf16.mxu0 0
    %420 = vmatpush1.bf16.msra.mxu0 %v319
    %421 = vmatprep.subr.bf16.mxu0 0
    %422 = vmatpush1.bf16.msra.mxu0 %v318
    %423 = vmatprep.subr.bf16.mxu0 0
    %424 = vmatpush2.bf16.msra.mxu0 0
    %425 = vmatprep.subr.bf16.mxu0 0
    %426 = vmatpush2.bf16.msra.mxu0 0
    %427 = vmatprep.subr.bf16.mxu0 0
    %428 = vmatpush2.bf16.msra.mxu0 0
    %429 = vmatprep.subr.bf16.mxu0 0
    %430 = vmatpush2.bf16.msra.mxu0 0
    %431 = vmatprep.subr.bf16.mxu0 0
    %432 = vmatpush2.bf16.msra.mxu0 0
    %433 = vmatprep.subr.bf16.mxu0 0
    %434 = vmatpush2.bf16.msra.mxu0 0
    %435 = vmatprep.subr.bf16.mxu0 0
    %436 = vmatpush2.bf16.msra.mxu0 0
    %437 = vmatprep.subr.bf16.mxu0 0
    %438 = vmatpush2.bf16.msra.mxu0 0
    %439 = vmatprep.mubr.bf16.mxu0 0
    %440 = vmatmul.mubr.bf16.gmra.mxu0 %v405
    %v441 = vpop.f32.mrf.mxu0
    %v442 = vadd.f32 %v308, %v441
    %v443 = vpop.f32.mrf.mxu0
    %v444 = vpop.f32.mrf.mxu0
    %v445 = vpop.f32.mrf.mxu0
    %446 = vdwg.mxu0
    %v447 = vadd.f32 %v275, %v442
    %v448 = vxor.u32 %v447, 2147483648
    %v449 = vmul.f32 %v448, 1.442695
    %v450 = vpow.pop %v449
    %v451 = vadd.f32 %v450, 1.0
    %v452 = vrcp.pop %v451
    %v453 = vmul.f32 1.0, %v452
    %455 = vrot.lane.b32.xlu0 %v442, 64
    %v456 = vpop.permute.xlu0 %455
    %v458 = vmul.f32 %v453, %v456
    %460 = vrot.lane.b32.xlu0 %v458, 64
    %v461 = vpop.permute.xlu0 %460
    %v463 = vadd.f32 %v275, %v461
    %v464 = vtanh.pop %v463
    %v465 = vsub.f32 1.0, %v453
    %467 = vrot.lane.b32.xlu0 %v464, 96
    %v468 = vpop.permute.xlu0 %467
    %v470 = vmul.f32 %v465, %v468
    %v471 = vmul.f32 %v453, %v394
    %v472 = vadd.f32 %v470, %v471
    %474 = vrot.lane.b32.xlu0 %v472, 96
    %v475 = vpop.permute.xlu0 %474
    %477 = vst.msk [vmem:[#allocation2 + $0x8] sm:$0xff] %vm117, %v475
    %v478 = vpack.c.bf16 %v472, %v472
    %480 = vrot.lane.b32.xlu0 %v478, 96
    %v481 = vpop.permute.xlu0 %480
    %v483 = vsel %vm117, %v481, 0
    %485 = vmatprep.subr.bf16.mxu0 0
    %486 = vmatpush1.bf16.msra.mxu0 0
    %487 = vmatprep.subr.bf16.mxu0 0
    %488 = vmatpush1.bf16.msra.mxu0 0
    %489 = vmatprep.subr.bf16.mxu0 0
    %490 = vmatpush1.bf16.msra.mxu0 0
    %491 = vmatprep.subr.bf16.mxu0 0
    %492 = vmatpush1.bf16.msra.mxu0 0
    %493 = vmatprep.subr.bf16.mxu0 0
    %494 = vmatpush1.bf16.msra.mxu0 0
    %495 = vmatprep.subr.bf16.mxu0 0
    %496 = vmatpush1.bf16.msra.mxu0 0
    %497 = vmatprep.subr.bf16.mxu0 0
    %498 = vmatpush1.bf16.msra.mxu0 %v319
    %499 = vmatprep.subr.bf16.mxu0 0
    %500 = vmatpush1.bf16.msra.mxu0 %v318
    %501 = vmatprep.subr.bf16.mxu0 0
    %502 = vmatpush2.bf16.msra.mxu0 0
    %503 = vmatprep.subr.bf16.mxu0 0
    %504 = vmatpush2.bf16.msra.mxu0 0
    %505 = vmatprep.subr.bf16.mxu0 0
    %506 = vmatpush2.bf16.msra.mxu0 0
    %507 = vmatprep.subr.bf16.mxu0 0
    %508 = vmatpush2.bf16.msra.mxu0 0
    %509 = vmatprep.subr.bf16.mxu0 0
    %510 = vmatpush2.bf16.msra.mxu0 0
    %511 = vmatprep.subr.bf16.mxu0 0
    %512 = vmatpush2.bf16.msra.mxu0 0
    %513 = vmatprep.subr.bf16.mxu0 0
    %514 = vmatpush2.bf16.msra.mxu0 0
    %515 = vmatprep.subr.bf16.mxu0 0
    %516 = vmatpush2.bf16.msra.mxu0 0
    %517 = vmatprep.mubr.bf16.mxu0 0
    %518 = vmatmul.mubr.bf16.gmra.mxu0 %v483
    %v519 = vpop.f32.mrf.mxu0
    %v520 = vadd.f32 %v308, %v519
    %v521 = vpop.f32.mrf.mxu0
    %v522 = vpop.f32.mrf.mxu0
    %v523 = vpop.f32.mrf.mxu0
    %524 = vdwg.mxu0
    %v525 = vadd.f32 %v280, %v520
    %v526 = vxor.u32 %v525, 2147483648
    %v527 = vmul.f32 %v526, 1.442695
    %v528 = vpow.pop %v527
    %v529 = vadd.f32 %v528, 1.0
    %v530 = vrcp.pop %v529
    %v531 = vmul.f32 1.0, %v530
    %533 = vrot.lane.b32.xlu0 %v520, 64
    %v534 = vpop.permute.xlu0 %533
    %v536 = vmul.f32 %v531, %v534
    %538 = vrot.lane.b32.xlu0 %v536, 64
    %v539 = vpop.permute.xlu0 %538
    %v541 = vadd.f32 %v280, %v539
    %v542 = vtanh.pop %v541
    %v543 = vsub.f32 1.0, %v531
    %545 = vrot.lane.b32.xlu0 %v542, 96
    %v546 = vpop.permute.xlu0 %545
    %v548 = vmul.f32 %v543, %v546
    %v549 = vmul.f32 %v531, %v472
    %v550 = vadd.f32 %v548, %v549
    %552 = vrot.lane.b32.xlu0 %v550, 96
    %v553 = vpop.permute.xlu0 %552
    %555 = vst.msk [vmem:[#allocation2 + $0x10] sm:$0xff] %vm117, %v553
    %v556 = vpack.c.bf16 %v550, %v550
    %558 = vrot.lane.b32.xlu0 %v556, 96
    %v559 = vpop.permute.xlu0 %558
    %v561 = vsel %vm117, %v559, 0
    %563 = vmatprep.subr.bf16.mxu0 0
    %564 = vmatpush1.bf16.msra.mxu0 0
    %565 = vmatprep.subr.bf16.mxu0 0
    %566 = vmatpush1.bf16.msra.mxu0 0
    %567 = vmatprep.subr.bf16.mxu0 0
    %568 = vmatpush1.bf16.msra.mxu0 0
    %569 = vmatprep.subr.bf16.mxu0 0
    %570 = vmatpush1.bf16.msra.mxu0 0
    %571 = vmatprep.subr.bf16.mxu0 0
    %572 = vmatpush1.bf16.msra.mxu0 0
    %573 = vmatprep.subr.bf16.mxu0 0
    %574 = vmatpush1.bf16.msra.mxu0 0
    %575 = vmatprep.subr.bf16.mxu0 0
    %576 = vmatpush1.bf16.msra.mxu0 %v319
    %577 = vmatprep.subr.bf16.mxu0 0
    %578 = vmatpush1.bf16.msra.mxu0 %v318
    %579 = vmatprep.subr.bf16.mxu0 0
    %580 = vmatpush2.bf16.msra.mxu0 0
    %581 = vmatprep.subr.bf16.mxu0 0
    %582 = vmatpush2.bf16.msra.mxu0 0
    %583 = vmatprep.subr.bf16.mxu0 0
    %584 = vmatpush2.bf16.msra.mxu0 0
    %585 = vmatprep.subr.bf16.mxu0 0
    %586 = vmatpush2.bf16.msra.mxu0 0
    %587 = vmatprep.subr.bf16.mxu0 0
    %588 = vmatpush2.bf16.msra.mxu0 0
    %589 = vmatprep.subr.bf16.mxu0 0
    %590 = vmatpush2.bf16.msra.mxu0 0
    %591 = vmatprep.subr.bf16.mxu0 0
    %592 = vmatpush2.bf16.msra.mxu0 0
    %593 = vmatprep.subr.bf16.mxu0 0
    %594 = vmatpush2.bf16.msra.mxu0 0
    %595 = vmatprep.mubr.bf16.mxu0 0
    %596 = vmatmul.mubr.bf16.gmra.mxu0 %v561
    %v597 = vpop.f32.mrf.mxu0
    %v598 = vadd.f32 %v308, %v597
    %v599 = vpop.f32.mrf.mxu0
    %v600 = vpop.f32.mrf.mxu0
    %v601 = vpop.f32.mrf.mxu0
    %602 = vdwg.mxu0
    %v603 = vadd.f32 %v283, %v598
    %v604 = vxor.u32 %v603, 2147483648
    %v605 = vmul.f32 %v604, 1.442695
    %v606 = vpow.pop %v605
    %v607 = vadd.f32 %v606, 1.0
    %v608 = vrcp.pop %v607
    %v609 = vmul.f32 1.0, %v608
    %611 = vrot.lane.b32.xlu0 %v598, 64
    %v612 = vpop.permute.xlu0 %611
    %v614 = vmul.f32 %v609, %v612
    %616 = vrot.lane.b32.xlu0 %v614, 64
    %v617 = vpop.permute.xlu0 %616
    %v619 = vadd.f32 %v283, %v617
    %v620 = vtanh.pop %v619
    %v621 = vsub.f32 1.0, %v609
    %623 = vrot.lane.b32.xlu0 %v620, 96
    %v624 = vpop.permute.xlu0 %623
    %v626 = vmul.f32 %v621, %v624
    %v627 = vmul.f32 %v609, %v550
    %v628 = vadd.f32 %v626, %v627
    %630 = vrot.lane.b32.xlu0 %v628, 96
    %v631 = vpop.permute.xlu0 %630
    %633 = vst.msk [vmem:[#allocation2 + $0x18] sm:$0xff] %vm117, %v631
    %v634 = vpack.c.bf16 %v628, %v628
    %636 = vrot.lane.b32.xlu0 %v634, 96
    %v637 = vpop.permute.xlu0 %636
    %v639 = vsel %vm117, %v637, 0
    %641 = vmatprep.subr.bf16.mxu0 0
    %642 = vmatpush1.bf16.msra.mxu0 0
    %643 = vmatprep.subr.bf16.mxu0 0
    %644 = vmatpush1.bf16.msra.mxu0 0
    %645 = vmatprep.subr.bf16.mxu0 0
    %646 = vmatpush1.bf16.msra.mxu0 0
    %647 = vmatprep.subr.bf16.mxu0 0
    %648 = vmatpush1.bf16.msra.mxu0 0
    %649 = vmatprep.subr.bf16.mxu0 0
    %650 = vmatpush1.bf16.msra.mxu0 0
    %651 = vmatprep.subr.bf16.mxu0 0
    %652 = vmatpush1.bf16.msra.mxu0 0
    %653 = vmatprep.subr.bf16.mxu0 0
    %654 = vmatpush1.bf16.msra.mxu0 %v319
    %655 = vmatprep.subr.bf16.mxu0 0
    %656 = vmatpush1.bf16.msra.mxu0 %v318
    %657 = vmatprep.subr.bf16.mxu0 0
    %658 = vmatpush2.bf16.msra.mxu0 0
    %659 = vmatprep.subr.bf16.mxu0 0
    %660 = vmatpush2.bf16.msra.mxu0 0
    %661 = vmatprep.subr.bf16.mxu0 0
    %662 = vmatpush2.bf16.msra.mxu0 0
    %663 = vmatprep.subr.bf16.mxu0 0
    %664 = vmatpush2.bf16.msra.mxu0 0
    %665 = vmatprep.subr.bf16.mxu0 0
    %666 = vmatpush2.bf16.msra.mxu0 0
    %667 = vmatprep.subr.bf16.mxu0 0
    %668 = vmatpush2.bf16.msra.mxu0 0
    %669 = vmatprep.subr.bf16.mxu0 0
    %670 = vmatpush2.bf16.msra.mxu0 0
    %671 = vmatprep.subr.bf16.mxu0 0
    %672 = vmatpush2.bf16.msra.mxu0 0
    %673 = vmatprep.mubr.bf16.mxu0 0
    %674 = vmatmul.mubr.bf16.gmra.mxu0 %v639
    %v675 = vpop.f32.mrf.mxu0
    %v676 = vadd.f32 %v308, %v675
    %v677 = vpop.f32.mrf.mxu0
    %v678 = vpop.f32.mrf.mxu0
    %v679 = vpop.f32.mrf.mxu0
    %680 = vdwg.mxu0
    %v681 = vadd.f32 %v288, %v676
    %v682 = vxor.u32 %v681, 2147483648
    %v683 = vmul.f32 %v682, 1.442695
    %v684 = vpow.pop %v683
    %v685 = vadd.f32 %v684, 1.0
    %v686 = vrcp.pop %v685
    %v687 = vmul.f32 1.0, %v686
    %689 = vrot.lane.b32.xlu0 %v676, 64
    %v690 = vpop.permute.xlu0 %689
    %v692 = vmul.f32 %v687, %v690
    %694 = vrot.lane.b32.xlu0 %v692, 64
    %v695 = vpop.permute.xlu0 %694
    %v697 = vadd.f32 %v288, %v695
    %v698 = vtanh.pop %v697
    %v699 = vsub.f32 1.0, %v687
    %701 = vrot.lane.b32.xlu0 %v698, 96
    %v702 = vpop.permute.xlu0 %701
    %v704 = vmul.f32 %v699, %v702
    %v705 = vmul.f32 %v687, %v628
    %v706 = vadd.f32 %v704, %v705
    %708 = vrot.lane.b32.xlu0 %v706, 96
    %v709 = vpop.permute.xlu0 %708
    %711 = vst.msk [vmem:[#allocation2 + $0x20] sm:$0xff] %vm117, %v709
    %v712 = vpack.c.bf16 %v706, %v706
    %714 = vrot.lane.b32.xlu0 %v712, 96
    %v715 = vpop.permute.xlu0 %714
    %v717 = vsel %vm117, %v715, 0
    %719 = vmatprep.subr.bf16.mxu0 0
    %720 = vmatpush1.bf16.msra.mxu0 0
    %721 = vmatprep.subr.bf16.mxu0 0
    %722 = vmatpush1.bf16.msra.mxu0 0
    %723 = vmatprep.subr.bf16.mxu0 0
    %724 = vmatpush1.bf16.msra.mxu0 0
    %725 = vmatprep.subr.bf16.mxu0 0
    %726 = vmatpush1.bf16.msra.mxu0 0
    %727 = vmatprep.subr.bf16.mxu0 0
    %728 = vmatpush1.bf16.msra.mxu0 0
    %729 = vmatprep.subr.bf16.mxu0 0
    %730 = vmatpush1.bf16.msra.mxu0 0
    %731 = vmatprep.subr.bf16.mxu0 0
    %732 = vmatpush1.bf16.msra.mxu0 %v319
    %733 = vmatprep.subr.bf16.mxu0 0
    %734 = vmatpush1.bf16.msra.mxu0 %v318
    %735 = vmatprep.subr.bf16.mxu0 0
    %736 = vmatpush2.bf16.msra.mxu0 0
    %737 = vmatprep.subr.bf16.mxu0 0
    %738 = vmatpush2.bf16.msra.mxu0 0
    %739 = vmatprep.subr.bf16.mxu0 0
    %740 = vmatpush2.bf16.msra.mxu0 0
    %741 = vmatprep.subr.bf16.mxu0 0
    %742 = vmatpush2.bf16.msra.mxu0 0
    %743 = vmatprep.subr.bf16.mxu0 0
    %744 = vmatpush2.bf16.msra.mxu0 0
    %745 = vmatprep.subr.bf16.mxu0 0
    %746 = vmatpush2.bf16.msra.mxu0 0
    %747 = vmatprep.subr.bf16.mxu0 0
    %748 = vmatpush2.bf16.msra.mxu0 0
    %749 = vmatprep.subr.bf16.mxu0 0
    %750 = vmatpush2.bf16.msra.mxu0 0
    %751 = vmatprep.mubr.bf16.mxu0 0
    %752 = vmatmul.mubr.bf16.gmra.mxu0 %v717
    %v753 = vpop.f32.mrf.mxu0
    %v754 = vadd.f32 %v308, %v753
    %v755 = vpop.f32.mrf.mxu0
    %v756 = vpop.f32.mrf.mxu0
    %v757 = vpop.f32.mrf.mxu0
    %758 = vdwg.mxu0
    %v759 = vadd.f32 %v291, %v754
    %v760 = vxor.u32 %v759, 2147483648
    %v761 = vmul.f32 %v760, 1.442695
    %v762 = vpow.pop %v761
    %v763 = vadd.f32 %v762, 1.0
    %v764 = vrcp.pop %v763
    %v765 = vmul.f32 1.0, %v764
    %767 = vrot.lane.b32.xlu0 %v754, 64
    %v768 = vpop.permute.xlu0 %767
    %v770 = vmul.f32 %v765, %v768
    %772 = vrot.lane.b32.xlu0 %v770, 64
    %v773 = vpop.permute.xlu0 %772
    %v775 = vadd.f32 %v291, %v773
    %v776 = vtanh.pop %v775
    %v777 = vsub.f32 1.0, %v765
    %779 = vrot.lane.b32.xlu0 %v776, 96
    %v780 = vpop.permute.xlu0 %779
    %v782 = vmul.f32 %v777, %v780
    %v783 = vmul.f32 %v765, %v706
    %v784 = vadd.f32 %v782, %v783
    %786 = vrot.lane.b32.xlu0 %v784, 96
    %v787 = vpop.permute.xlu0 %786
    %789 = vst.msk [vmem:[#allocation2 + $0x28] sm:$0xff] %vm117, %v787
    %v790 = vpack.c.bf16 %v784, %v784
    %792 = vrot.lane.b32.xlu0 %v790, 96
    %v793 = vpop.permute.xlu0 %792
    %v795 = vsel %vm117, %v793, 0
    %797 = vmatprep.subr.bf16.mxu0 0
    %798 = vmatpush1.bf16.msra.mxu0 0
    %799 = vmatprep.subr.bf16.mxu0 0
    %800 = vmatpush1.bf16.msra.mxu0 0
    %801 = vmatprep.subr.bf16.mxu0 0
    %802 = vmatpush1.bf16.msra.mxu0 0
    %803 = vmatprep.subr.bf16.mxu0 0
    %804 = vmatpush1.bf16.msra.mxu0 0
    %805 = vmatprep.subr.bf16.mxu0 0
    %806 = vmatpush1.bf16.msra.mxu0 0
    %807 = vmatprep.subr.bf16.mxu0 0
    %808 = vmatpush1.bf16.msra.mxu0 0
    %809 = vmatprep.subr.bf16.mxu0 0
    %810 = vmatpush1.bf16.msra.mxu0 %v319
    %811 = vmatprep.subr.bf16.mxu0 0
    %812 = vmatpush1.bf16.msra.mxu0 %v318
    %813 = vmatprep.subr.bf16.mxu0 0
    %814 = vmatpush2.bf16.msra.mxu0 0
    %815 = vmatprep.subr.bf16.mxu0 0
    %816 = vmatpush2.bf16.msra.mxu0 0
    %817 = vmatprep.subr.bf16.mxu0 0
    %818 = vmatpush2.bf16.msra.mxu0 0
    %819 = vmatprep.subr.bf16.mxu0 0
    %820 = vmatpush2.bf16.msra.mxu0 0
    %821 = vmatprep.subr.bf16.mxu0 0
    %822 = vmatpush2.bf16.msra.mxu0 0
    %823 = vmatprep.subr.bf16.mxu0 0
    %824 = vmatpush2.bf16.msra.mxu0 0
    %825 = vmatprep.subr.bf16.mxu0 0
    %826 = vmatpush2.bf16.msra.mxu0 0
    %827 = vmatprep.subr.bf16.mxu0 0
    %828 = vmatpush2.bf16.msra.mxu0 0
    %829 = vmatprep.mubr.bf16.mxu0 0
    %830 = vmatmul.mubr.bf16.gmra.mxu0 %v795
    %v831 = vpop.f32.mrf.mxu0
    %v832 = vadd.f32 %v308, %v831
    %v833 = vpop.f32.mrf.mxu0
    %v834 = vpop.f32.mrf.mxu0
    %v835 = vpop.f32.mrf.mxu0
    %836 = vdwg.mxu0
    %v837 = vadd.f32 %v296, %v832
    %v838 = vxor.u32 %v837, 2147483648
    %v839 = vmul.f32 %v838, 1.442695
    %v840 = vpow.pop %v839
    %v841 = vadd.f32 %v840, 1.0
    %v842 = vrcp.pop %v841
    %v843 = vmul.f32 1.0, %v842
    %845 = vrot.lane.b32.xlu0 %v832, 64
    %v846 = vpop.permute.xlu0 %845
    %v848 = vmul.f32 %v843, %v846
    %850 = vrot.lane.b32.xlu0 %v848, 64
    %v851 = vpop.permute.xlu0 %850
    %v853 = vadd.f32 %v296, %v851
    %v854 = vtanh.pop %v853
    %v855 = vsub.f32 1.0, %v843
    %857 = vrot.lane.b32.xlu0 %v854, 96
    %v858 = vpop.permute.xlu0 %857
    %v860 = vmul.f32 %v855, %v858
    %v861 = vmul.f32 %v843, %v784
    %v862 = vadd.f32 %v860, %v861
    %864 = vrot.lane.b32.xlu0 %v862, 96
    %v865 = vpop.permute.xlu0 %864
    %867 = vst.msk [vmem:[#allocation2 + $0x30] sm:$0xff] %vm117, %v865
    %v868 = vpack.c.bf16 %v862, %v862
    %870 = vrot.lane.b32.xlu0 %v868, 96
    %v871 = vpop.permute.xlu0 %870
    %v873 = vsel %vm117, %v871, 0
    %875 = vmatprep.subr.bf16.mxu0 0
    %876 = vmatpush1.bf16.msra.mxu0 0
    %877 = vmatprep.subr.bf16.mxu0 0
    %878 = vmatpush1.bf16.msra.mxu0 0
    %879 = vmatprep.subr.bf16.mxu0 0
    %880 = vmatpush1.bf16.msra.mxu0 0
    %881 = vmatprep.subr.bf16.mxu0 0
    %882 = vmatpush1.bf16.msra.mxu0 0
    %883 = vmatprep.subr.bf16.mxu0 0
    %884 = vmatpush1.bf16.msra.mxu0 0
    %885 = vmatprep.subr.bf16.mxu0 0
    %886 = vmatpush1.bf16.msra.mxu0 0
    %887 = vmatprep.subr.bf16.mxu0 0
    %888 = vmatpush1.bf16.msra.mxu0 %v319
    %889 = vmatprep.subr.bf16.mxu0 0
    %890 = vmatpush1.bf16.msra.mxu0 %v318
    %891 = vmatprep.subr.bf16.mxu0 0
    %892 = vmatpush2.bf16.msra.mxu0 0
    %893 = vmatprep.subr.bf16.mxu0 0
    %894 = vmatpush2.bf16.msra.mxu0 0
    %895 = vmatprep.subr.bf16.mxu0 0
    %896 = vmatpush2.bf16.msra.mxu0 0
    %897 = vmatprep.subr.bf16.mxu0 0
    %898 = vmatpush2.bf16.msra.mxu0 0
    %899 = vmatprep.subr.bf16.mxu0 0
    %900 = vmatpush2.bf16.msra.mxu0 0
    %901 = vmatprep.subr.bf16.mxu0 0
    %902 = vmatpush2.bf16.msra.mxu0 0
    %903 = vmatprep.subr.bf16.mxu0 0
    %904 = vmatpush2.bf16.msra.mxu0 0
    %905 = vmatprep.subr.bf16.mxu0 0
    %906 = vmatpush2.bf16.msra.mxu0 0
    %907 = vmatprep.mubr.bf16.mxu0 0
    %908 = vmatmul.mubr.bf16.gmra.mxu0 %v873
    %v909 = vpop.f32.mrf.mxu0
    %v910 = vadd.f32 %v308, %v909
    %v911 = vpop.f32.mrf.mxu0
    %v912 = vpop.f32.mrf.mxu0
    %v913 = vpop.f32.mrf.mxu0
    %914 = vdwg.mxu0
    %v915 = vadd.f32 %v299, %v910
    %v916 = vxor.u32 %v915, 2147483648
    %v917 = vmul.f32 %v916, 1.442695
    %v918 = vpow.pop %v917
    %v919 = vadd.f32 %v918, 1.0
    %v920 = vrcp.pop %v919
    %v921 = vmul.f32 1.0, %v920
    %923 = vrot.lane.b32.xlu0 %v910, 64
    %v924 = vpop.permute.xlu0 %923
    %v926 = vmul.f32 %v921, %v924
    %928 = vrot.lane.b32.xlu0 %v926, 64
    %v929 = vpop.permute.xlu0 %928
    %v931 = vadd.f32 %v299, %v929
    %v932 = vtanh.pop %v931
    %v933 = vsub.f32 1.0, %v921
    %935 = vrot.lane.b32.xlu0 %v932, 96
    %v936 = vpop.permute.xlu0 %935
    %v938 = vmul.f32 %v933, %v936
    %v939 = vmul.f32 %v921, %v862
    %v940 = vadd.f32 %v938, %v939
    %942 = vrot.lane.b32.xlu0 %v940, 96
    %v943 = vpop.permute.xlu0 %942
    %945 = vst.msk [vmem:[#allocation2 + $0x38] sm:$0xff] %vm117, %v943
    %946 = vst.msk [vmem:[#allocation6] sm:$0xff] %vm117, %v943
    %v947 = vld [vmem:[#allocation2] sm:$0xff]
    %v948 = vld [vmem:[#allocation2 + $0x8] sm:$0xff]
    %v949 = vld [vmem:[#allocation2 + $0x10] sm:$0xff]
    %v950 = vld [vmem:[#allocation2 + $0x18] sm:$0xff]
    %v951 = vld [vmem:[#allocation2 + $0x20] sm:$0xff]
    %v952 = vld [vmem:[#allocation2 + $0x28] sm:$0xff]
    %v953 = vld [vmem:[#allocation2 + $0x30] sm:$0xff]
    %v954 = vld [vmem:[#allocation2 + $0x38] sm:$0xff]
    %v955 = vpack.c.bf16 %v948, %v947
    %v956 = vpack.c.bf16 %v950, %v949
    %v957 = vpack.c.bf16 %v952, %v951
    %v958 = vpack.c.bf16 %v954, %v953
    %v960 = vlaneseq
    %v961 = vshrl.u32 %v960, 7
    %v962 = vsub.s32 0, %v961
    %v963 = vrot.slane %v70, %v962
    %v969 = vunpack.c.l.b16 %v66
    %v970 = vunpack.c.l.b16 %v67
    %v971 = vunpack.c.l.b16 %v68
    %v972 = vunpack.c.l.b16 %v69
    %v973 = vpack.c.b16 %v970, %v969
    %v974 = vpack.c.b16 %v972, %v971
    %v978 = vsel %vm117, %v955, 0
    %v981 = vsel %vm117, %v956, 0
    %v984 = vsel %vm117, %v957, 0
    %v987 = vsel %vm117, %v958, 0
    %989 = vmatprep.subr.bf16.mxu0 0
    %990 = vmatpush1.bf16.msra.mxu0 0
    %991 = vmatprep.subr.bf16.mxu0 0
    %992 = vmatpush1.bf16.msra.mxu0 0
    %993 = vmatprep.subr.bf16.mxu0 0
    %994 = vmatpush1.bf16.msra.mxu0 0
    %995 = vmatprep.subr.bf16.mxu0 0
    %996 = vmatpush1.bf16.msra.mxu0 0
    %997 = vmatprep.subr.bf16.mxu0 0
    %998 = vmatpush1.bf16.msra.mxu0 0
    %999 = vmatprep.subr.bf16.mxu0 0
    %1000 = vmatpush1.bf16.msra.mxu0 0
    %1001 = vmatprep.subr.bf16.mxu0 0
    %1002 = vmatpush1.bf16.msra.mxu0 %v974
    %1003 = vmatprep.subr.bf16.mxu0 0
    %1004 = vmatpush1.bf16.msra.mxu0 %v973
    %1005 = vmatprep.subr.bf16.mxu0 0
    %1006 = vmatpush2.bf16.msra.mxu0 0
    %1007 = vmatprep.subr.bf16.mxu0 0
    %1008 = vmatpush2.bf16.msra.mxu0 0
    %1009 = vmatprep.subr.bf16.mxu0 0
    %1010 = vmatpush2.bf16.msra.mxu0 0
    %1011 = vmatprep.subr.bf16.mxu0 0
    %1012 = vmatpush2.bf16.msra.mxu0 0
    %1013 = vmatprep.subr.bf16.mxu0 0
    %1014 = vmatpush2.bf16.msra.mxu0 0
    %1015 = vmatprep.subr.bf16.mxu0 0
    %1016 = vmatpush2.bf16.msra.mxu0 0
    %1017 = vmatprep.subr.bf16.mxu0 0
    %1018 = vmatpush2.bf16.msra.mxu0 0
    %1019 = vmatprep.subr.bf16.mxu0 0
    %1020 = vmatpush2.bf16.msra.mxu0 0
    %1021 = vmatprep.mubr.bf16.mxu0 0
    %1022 = vmatmul.mubr.bf16.gmra.mxu0 %v978
    %v1023 = vpop.f32.mrf.mxu0
    %v1024 = vadd.f32 %v963, %v1023
    %v1025 = vpop.f32.mrf.mxu0
    %v1026 = vpop.f32.mrf.mxu0
    %v1027 = vadd.f32 %v963, %v1026
    %v1028 = vpop.f32.mrf.mxu0
    %1029 = vmatprep.mubr.bf16.mxu0 0
    %1030 = vmatmul.mubr.bf16.gmra.mxu0 %v981
    %v1031 = vpop.f32.mrf.mxu0
    %v1032 = vadd.f32 %v963, %v1031
    %v1033 = vpop.f32.mrf.mxu0
    %v1034 = vpop.f32.mrf.mxu0
    %v1035 = vadd.f32 %v963, %v1034
    %v1036 = vpop.f32.mrf.mxu0
    %1037 = vmatprep.mubr.bf16.mxu0 0
    %1038 = vmatmul.mubr.bf16.gmra.mxu0 %v984
    %v1039 = vpop.f32.mrf.mxu0
    %v1040 = vadd.f32 %v963, %v1039
    %v1041 = vpop.f32.mrf.mxu0
    %v1042 = vpop.f32.mrf.mxu0
    %v1043 = vadd.f32 %v963, %v1042
    %v1044 = vpop.f32.mrf.mxu0
    %1045 = vmatprep.mubr.bf16.mxu0 0
    %1046 = vmatmul.mubr.bf16.gmra.mxu0 %v987
    %v1047 = vpop.f32.mrf.mxu0
    %v1048 = vadd.f32 %v963, %v1047
    %v1049 = vpop.f32.mrf.mxu0
    %v1050 = vpop.f32.mrf.mxu0
    %v1051 = vadd.f32 %v963, %v1050
    %v1052 = vpop.f32.mrf.mxu0
    %1053 = vdwg.mxu0
    %vm1054 = vcmask 64512
    %1055 = vst.msk [vmem:[%s10] sm:$0xff] %vm1054, %v1024
    %1056 = vst.msk [vmem:[%s10 + $0x8] sm:$0xff] %vm1054, %v1027
    %1057 = vst.msk [vmem:[%s10 + $0x10] sm:$0xff] %vm1054, %v1032
    %1058 = vst.msk [vmem:[%s10 + $0x18] sm:$0xff] %vm1054, %v1035
    %1059 = vst.msk [vmem:[%s10 + $0x20] sm:$0xff] %vm1054, %v1040
    %1060 = vst.msk [vmem:[%s10 + $0x28] sm:$0xff] %vm1054, %v1043
    %1061 = vst.msk [vmem:[%s10 + $0x30] sm:$0xff] %vm1054, %v1048
    %1062 = vst.msk [vmem:[%s10 + $0x38] sm:$0xff] %vm1054, %v1051
    // Predicated region
    $region46: #{tpu_custom_call.1} parent=1 // pred_check
      _
    $region47: #{tpu_custom_call.1} parent=1 // pred_check_branch
      %1064 = sbr.rel (0) target = $region49
    $region48: #{tpu_custom_call.1} parent=1 // pred_region
      _
    $region49: #{tpu_custom_call.1} parent=1 // pred_fallthru
      _
    // Predicated region
    $region50: #{tpu_custom_call.1} parent=1 // pred_check
      _
    $region51: #{tpu_custom_call.1} parent=1 // pred_check_branch
      %1066 = sbr.rel (0) target = $region53
    $region52: #{tpu_custom_call.1} parent=1 // pred_region
      %s1068 = ssub.s32 128, 128
      %1069 = vsyncadd [#allocation5], %s1068
      %s1071 = sshll.u32 [#allocation6], 4
      %s1072 = int_to_ptr.vmem [resolvable:$true] %s1071
      %1074 = dma.vmem_to_hbm [thread:$0]  %s1072, 128, %s11, [#allocation5]
    $region53: #{tpu_custom_call.1} parent=1 // pred_fallthru
      _
    // Predicated region
    $region54: #{tpu_custom_call.1} parent=1 // pred_check
      _
    $region55: #{tpu_custom_call.1} parent=1 // pred_check_branch
      %1076 = sbr.rel (0) target = $region57
    $region56: #{tpu_custom_call.1} parent=1 // pred_region
      _
    $region57: #{tpu_custom_call.1} parent=1 // pred_fallthru
      _
    // Predicated region
    $region58: #{tpu_custom_call.1} parent=1 // pred_check
      _
    $region59: #{tpu_custom_call.1} parent=1 // pred_check_branch
      %1078 = sbr.rel (0) target = $region61
    $region60: #{tpu_custom_call.1} parent=1 // pred_region
      %1079 = dma.done [#allocation5], 128
    $region61: #{tpu_custom_call.1} parent=1 // pred_fallthru
      _
    %1080 = vsyncpa [#allocation4], 1
    %1081 = vsyncpa [#allocation5], 1

</llo_original>
